<compile_context>
chip_gen: v6e
topology: v6e:2x2x1
jax: 0.10.0
libtpu: 0.0.40
codegen_flags: <defaults>
</compile_context>

<pallas_src>
import math
import functools

import jax
import jax.numpy as jnp
from jax import lax
from jax.experimental import pallas as pl
from jax.experimental.pallas import tpu as pltpu


def _pick_vmem_limit():
    """~70% of physical VMEM, capped at 96 MiB (v6e/v5e high, v7x ~44 MiB)."""
    phys = None
    try:
        info = pltpu.get_tpu_info()
        for name in ("vmem_capacity_bytes", "vmem_size_bytes", "vmem_bytes"):
            phys = getattr(info, name, None)
            if phys:
                break
    except Exception:
        phys = None
    if not phys:
        phys = 64 * 1024 * 1024  # conservative: v7x per-core physical VMEM
    return int(min(96 * 1024 * 1024, phys * 7 // 10))


def _self_attn_kernel(xkv_ref, kmask_ref, qmask_ref,
                      wqT_ref, wkT_ref, wvT_ref, woT_ref,
                      o_ref, k_scr, v_scr, head_acc_ref,
                      *, n_head, d_k, tq):
    """One (batch, query-block) tile per grid step.

    xkv_ref:   (1, d_model, Lp)       bf16  full-sequence slab (Q/K/V source)
    kmask_ref: (1, 1, Lp)             f32   mask over key positions (1 = masked)
    qmask_ref: (1, 1, TQ)             f32   mask over this query block
    wqT_ref:   (n_head*d_k, d_model)  bf16  Wq^T, pre-scaled by 1/sqrt(d_k)
    wkT_ref:   (n_head*d_k, d_model)  bf16  Wk^T
    wvT_ref:   (n_head*d_k, d_model)  bf16  Wv^T
    woT_ref:   (d_out, d_model)       bf16  Wo^T
    o_ref:     (1, d_out, TQ)         f32
    k_scr/v_scr: (n_head*d_k, Lp)     bf16  persistent K/V projections (per batch)
    head_acc_ref:(n_head*d_k, TQ)     f32|bf16  concatenated heads^T scratch
    """
    # K/V projections for the full sequence: computed once per batch element
    # (first query block, q grid axis is "arbitrary"/sequential) and reused by
    # every later query block of that batch.
    @pl.when(pl.program_id(1) == 0)
    def _():
        xkv = xkv_ref[0]                                          # (d_model, Lp)
        k_scr[...] = jnp.dot(wkT_ref[...], xkv,
                             preferred_element_type=jnp.float32).astype(k_scr.dtype)
        v_scr[...] = jnp.dot(wvT_ref[...], xkv,
                             preferred_element_type=jnp.float32).astype(v_scr.dtype)

    # Query block sliced straight out of the resident full-sequence slab
    # (lane-aligned: TQ and the start offset are multiples of 128).
    q_start = pl.multiple_of(pl.program_id(1) * tq, 128)
    xq = xkv_ref[0, :, pl.ds(q_start, tq)]                        # (d_model, TQ) bf16

    # Fused all-head Q projection; single f32->bf16 cast, no per-head transpose.
    # 1/sqrt(d_k) is folded into WqT.
    q_all = jnp.dot(wqT_ref[...], xq,
                    preferred_element_type=jnp.float32).astype(jnp.bfloat16)  # (H*dk, TQ)

    key_masked = kmask_ref[0] > 0.0                               # (1, Lp) bool
    neg_big = jnp.float32(-1e30)

    for h in range(n_head):        # static unroll, n_head is small
        lo, hi = h * d_k, (h + 1) * d_k
        q_h = q_all[lo:hi, :]                                     # (d_k, TQ) bf16
        k_h = k_scr[lo:hi, :]                                     # (d_k, Lp) bf16
        v_h = v_scr[lo:hi, :]                                     # (d_k, Lp) bf16

        # scores = q_h^T @ k_h: transposed-LHS MXU matmul, lane-dense operands.
        s = lax.dot_general(q_h, k_h, (((0,), (0,)), ((), ())),
                            preferred_element_type=jnp.float32)   # (TQ, Lp)
        s = jnp.where(key_masked, neg_big, s)                     # mask_logits

        # softmax over keys, f32; divide via EUP reciprocal.
        s_max = jnp.max(s, axis=-1, keepdims=True)
        p = jnp.exp(s - s_max)
        p = p * pl.reciprocal(jnp.sum(p, axis=-1, keepdims=True), approx=True)
        p = p.astype(jnp.bfloat16)

        # head_h^T = v_h contracted with p over the key axis -> (d_k, TQ).
        head_acc_ref[lo:hi, :] = lax.dot_general(
            v_h, p, (((1,), (1,)), ((), ())),
            preferred_element_type=jnp.float32).astype(head_acc_ref.dtype)

    # One output projection for all heads; fold the vmask per-query scaling in
    # here (it commutes with the linear p@V and @Wo stages).
    head_t = head_acc_ref[...].astype(jnp.bfloat16)               # (H*dk, TQ)
    out = jnp.dot(woT_ref[...], head_t,
                  preferred_element_type=jnp.float32)             # (d_out, TQ)
    o_ref[0] = (out * qmask_ref[0]).astype(o_ref.dtype)


def self_attention_pallas(x, mask, Wq, Wk, Wv, Wo, *, q_block=512):
    """x: (B, d_model, L) f32; mask: (B, L) f32 (1 = masked position).
    Wq/Wk/Wv: (n_head, d_model, d_k); Wo: (d_k*n_head, d_out).
    Returns (B, d_out, L), matching the PyTorch forward."""
    B, d_model, L = x.shape
    n_head, _, d_k = Wq.shape
    d_inner = n_head * d_k
    d_out = Wo.shape[1]
    assert Wo.shape[0] == d_inner

    # Pad the sequence to a lane-aligned multiple of 128 and pick a query tile
    # that divides it (no (L, L) fallback; lane-dense output stores).
    Lp = ((L + 127) // 128) * 128
    if Lp <= q_block:
        TQ = Lp
    else:
        TQ = 128
        for cand in (512, 384, 256):
            if cand <= q_block and Lp % cand == 0:
                TQ = cand
                break
    nq = Lp // TQ

    if Lp != L:
        # Padded key positions are marked masked (mask == 1) so they get -1e30
        # scores.  NOTE: only the degenerate "every real key masked" row
        # differs slightly from the unpadded reference (uniform over Lp vs L).
        x = jnp.pad(x, ((0, 0), (0, 0), (0, Lp - L)))
        mask = jnp.pad(mask, ((0, 0), (0, Lp - L)), constant_values=1.0)

    scale = 1.0 / math.sqrt(d_k)
    # Pre-transpose + fuse per-head weights: rows h*d_k:(h+1)*d_k of W*T belong
    # to head h.  Fold the 1/sqrt(d_k) score scale into Wq.
    WqT = (jnp.transpose(Wq, (0, 2, 1)).reshape(d_inner, d_model) * scale
           ).astype(jnp.bfloat16)
    WkT = jnp.transpose(Wk, (0, 2, 1)).reshape(d_inner, d_model).astype(jnp.bfloat16)
    WvT = jnp.transpose(Wv, (0, 2, 1)).reshape(d_inner, d_model).astype(jnp.bfloat16)
    WoT = jnp.transpose(Wo, (1, 0)).astype(jnp.bfloat16)          # (d_out, d_inner)

    x_bf = x.astype(jnp.bfloat16)                                 # (B, d_model, Lp)
    mask3 = mask.reshape(B, 1, Lp).astype(jnp.float32)            # consumed twice

    # bf16 head scratch only when per-head row slices stay sublane-pack aligned.
    acc_dtype = jnp.bfloat16 if d_k % 16 == 0 else jnp.float32

    kernel = functools.partial(_self_attn_kernel, n_head=n_head, d_k=d_k, tq=TQ)

    out = pl.pallas_call(
        kernel,
        out_shape=jax.ShapeDtypeStruct((B, d_out, Lp), jnp.float32),
        grid=(B, nq),
        in_specs=[
            pl.BlockSpec((1, d_model, Lp),   lambda b, q: (b, 0, 0)),   # x (full seq)
            pl.BlockSpec((1, 1, Lp),         lambda b, q: (b, 0, 0)),   # key-side mask
            pl.BlockSpec((1, 1, TQ),         lambda b, q: (b, 0, q)),   # query-side mask
            pl.BlockSpec((d_inner, d_model), lambda b, q: (0, 0)),      # WqT (pre-scaled)
            pl.BlockSpec((d_inner, d_model), lambda b, q: (0, 0)),      # WkT
            pl.BlockSpec((d_inner, d_model), lambda b, q: (0, 0)),      # WvT
            pl.BlockSpec((d_out, d_model),   lambda b, q: (0, 0)),      # WoT
        ],
        out_specs=pl.BlockSpec((1, d_out, TQ), lambda b, q: (b, 0, q)),
        scratch_shapes=[
            pltpu.VMEM((d_inner, Lp), jnp.bfloat16),   # cached K projection (per batch)
            pltpu.VMEM((d_inner, Lp), jnp.bfloat16),   # cached V projection (per batch)
            pltpu.VMEM((d_inner, TQ), acc_dtype),      # concatenated heads^T
        ],
        compiler_params=pltpu.CompilerParams(
            # B sharded across TensorCores; q must be sequential so the cached
            # K/V scratch (written at q == 0) is valid for later query blocks.
            dimension_semantics=("parallel", "arbitrary"),
            vmem_limit_bytes=_pick_vmem_limit()),
    )(x_bf, mask3, mask3, WqT, WkT, WvT, WoT)

    return out if Lp == L else out[:, :, :L]


def self_attention_ref(x, mask, Wq, Wk, Wv, Wo):
    """Pure-JAX f32 reference mirroring the PyTorch forward exactly."""
    n_head, _, d_k = Wq.shape
    x_t = jnp.transpose(x, (0, 2, 1))            # (B, L, d_model)
    hmask = mask[:, None, :]                     # (B, 1, L)
    vmask = mask[:, :, None]                     # (B, L, 1)
    inv = 1.0 / math.sqrt(d_k)
    heads = []
    for h in range(n_head):
        q = jnp.einsum("bld,dk->blk", x_t, Wq[h])
        k = jnp.einsum("bld,dk->blk", x_t, Wk[h])
        v = jnp.einsum("bld,dk->blk", x_t, Wv[h])
        s = jnp.einsum("blk,bmk->blm", q, k) * inv
        s = s * (1.0 - hmask) + hmask * (-1e30)
        p = jax.nn.softmax(s, axis=2) * vmask
        heads.append(jnp.einsum("blm,bmk->blk", p, v))
    head = jnp.concatenate(heads, axis=2)
    out = jnp.einsum("blm,mj->blj", head, Wo)
    return jnp.transpose(out, (0, 2, 1))


def _check(out, ref, tag):
    err = float(jnp.max(jnp.abs(out - ref)))
    ref_scale = float(jnp.max(jnp.abs(ref))) + 1e-12
    assert err / ref_scale < 5e-2, (
        f"{tag}: mismatch vs JAX reference, rel err {err / ref_scale:.3e}")


if __name__ == "__main__":
    # Small shapes consistent with the module: d_model == d_k * n_head required.
    B, L = 2, 16
    d_k, n_head = 8, 4
    d_model = d_k * n_head  # 32

    key = jax.random.PRNGKey(0)
    kx, km, ko, kq, kk, kv, kx2, km2 = jax.random.split(key, 8)

    # Deterministic parameter init mimicking kaiming/xavier uniform bounds.
    kaiming_bound = math.sqrt(6.0 / (d_k * n_head))
    xavier_bound = math.sqrt(6.0 / (d_model + d_k))
    Wo = jax.random.uniform(ko, (d_model, d_k * n_head), jnp.float32,
                            -kaiming_bound, kaiming_bound)
    Wq = jax.random.uniform(kq, (n_head, d_model, d_k), jnp.float32,
                            -xavier_bound, xavier_bound)
    Wk = jax.random.uniform(kk, (n_head, d_model, d_k), jnp.float32,
                            -xavier_bound, xavier_bound)
    Wv = jax.random.uniform(kv, (n_head, d_model, d_k), jnp.float32,
                            -xavier_bound, xavier_bound)

    # Case 1: tiny sequence (padded to 128, single query block).
    x = jax.random.normal(kx, (B, d_model, L), jnp.float32)
    mask = (jax.random.uniform(km, (B, L)) < 0.25).astype(jnp.float32)
    out = jax.block_until_ready(self_attention_pallas(x, mask, Wq, Wk, Wv, Wo))
    assert out.shape == (B, d_model, L)
    _check(out, self_attention_ref(x, mask, Wq, Wk, Wv, Wo), "case1")

    # Case 2: non-128-divisible L with multiple query blocks — exercises the
    # padding path and the cached-K/V (q == 0) path.
    L2 = 200
    x2 = jax.random.normal(kx2, (B, d_model, L2), jnp.float32)
    mask2 = (jax.random.uniform(km2, (B, L2)) < 0.25).astype(jnp.float32)
    out2 = jax.block_until_ready(
        self_attention_pallas(x2, mask2, Wq, Wk, Wv, Wo, q_block=128))
    assert out2.shape == (B, d_model, L2)
    _check(out2, self_attention_ref(x2, mask2, Wq, Wk, Wv, Wo), "case2")

    print("KERNEL_OK")
</pallas_src>

<mosaic_0001>
module attributes {stable_mosaic.version = 11 : i64} {
  func.func @_self_attn_kernel(%arg0: i32, %arg1: i32, %arg2: memref<1x32x128xbf16, #tpu.memory_space<vmem>>, %arg3: memref<1x1x128xf32, #tpu.memory_space<vmem>>, %arg4: memref<1x1x128xf32, #tpu.memory_space<vmem>>, %arg5: memref<32x32xbf16, #tpu.memory_space<vmem>>, %arg6: memref<32x32xbf16, #tpu.memory_space<vmem>>, %arg7: memref<32x32xbf16, #tpu.memory_space<vmem>>, %arg8: memref<32x32xbf16, #tpu.memory_space<vmem>>, %arg9: memref<1x32x128xf32, #tpu.memory_space<vmem>>, %arg10: memref<32x128xbf16, #tpu.memory_space<vmem>>, %arg11: memref<32x128xbf16, #tpu.memory_space<vmem>>, %arg12: memref<32x128xf32, #tpu.memory_space<vmem>>) attributes {dimension_semantics = [#tpu.dimension_semantics<parallel>, #tpu.dimension_semantics<arbitrary>], iteration_bounds = array<i64: 2, 1>, scalar_prefetch = 0 : i64, scratch_operands = 3 : i64, tpu.core_type = #tpu.core_type<tc>, window_params = [{transform_indices = @transform_0, window_bounds = array<i64: 1, 32, 128>}, {transform_indices = @transform_1, window_bounds = array<i64: 1, 1, 128>}, {transform_indices = @transform_2, window_bounds = array<i64: 1, 1, 128>}, {pipeline_mode = #tpu.pipeline_mode<synchronous>, transform_indices = @transform_3, window_bounds = array<i64: 32, 32>}, {pipeline_mode = #tpu.pipeline_mode<synchronous>, transform_indices = @transform_4, window_bounds = array<i64: 32, 32>}, {pipeline_mode = #tpu.pipeline_mode<synchronous>, transform_indices = @transform_5, window_bounds = array<i64: 32, 32>}, {pipeline_mode = #tpu.pipeline_mode<synchronous>, transform_indices = @transform_6, window_bounds = array<i64: 32, 32>}, {transform_indices = @transform_7, window_bounds = array<i64: 1, 32, 128>}]} {
    %c0_i32 = arith.constant 0 : i32
    %0 = arith.cmpi eq, %arg1, %c0_i32 : i32
    %1 = arith.extui %0 : i1 to i32
    %c0_i32_0 = arith.constant 0 : i32
    %2 = arith.cmpi ne, %1, %c0_i32_0 : i32
    scf.if %2 {
      %c0_60 = arith.constant 0 : index
      %c0_61 = arith.constant 0 : index
      %c0_62 = arith.constant 0 : index
      %110 = vector.load %arg2[%c0_60, %c0_61, %c0_62] : memref<1x32x128xbf16, #tpu.memory_space<vmem>>, vector<1x32x128xbf16>
      %111 = vector.shape_cast %110 : vector<1x32x128xbf16> to vector<32x128xbf16>
      %c0_63 = arith.constant 0 : index
      %c0_64 = arith.constant 0 : index
      %112 = vector.load %arg6[%c0_63, %c0_64] : memref<32x32xbf16, #tpu.memory_space<vmem>>, vector<32x32xbf16>
      %cst_65 = arith.constant dense<0.000000e+00> : vector<32x128xf32>
      %113 = tpu.matmul %112, %111, %cst_65 {dimension_numbers = #tpu.dot_dimension_numbers<[1], [0], [0], [1], [0, 0, 1, 1], [], []>} : vector<32x32xbf16>, vector<32x128xbf16>, vector<32x128xf32> -> vector<32x128xf32>
      %114 = arith.truncf %113 : vector<32x128xf32> to vector<32x128xbf16>
      %c0_66 = arith.constant 0 : index
      %c0_67 = arith.constant 0 : index
      %115 = vector.load %arg10[%c0_66, %c0_67] : memref<32x128xbf16, #tpu.memory_space<vmem>>, vector<32x128xbf16>
      tpu.vector_store %arg10[%c0_66, %c0_67], %114 {strides = array<i32>} : memref<32x128xbf16, #tpu.memory_space<vmem>>, vector<32x128xbf16>,
      %c0_68 = arith.constant 0 : index
      %c0_69 = arith.constant 0 : index
      %116 = vector.load %arg7[%c0_68, %c0_69] : memref<32x32xbf16, #tpu.memory_space<vmem>>, vector<32x32xbf16>
      %cst_70 = arith.constant dense<0.000000e+00> : vector<32x128xf32>
      %117 = tpu.matmul %116, %111, %cst_70 {dimension_numbers = #tpu.dot_dimension_numbers<[1], [0], [0], [1], [0, 0, 1, 1], [], []>} : vector<32x32xbf16>, vector<32x128xbf16>, vector<32x128xf32> -> vector<32x128xf32>
      %118 = arith.truncf %117 : vector<32x128xf32> to vector<32x128xbf16>
      %c0_71 = arith.constant 0 : index
      %c0_72 = arith.constant 0 : index
      %119 = vector.load %arg11[%c0_71, %c0_72] : memref<32x128xbf16, #tpu.memory_space<vmem>>, vector<32x128xbf16>
      tpu.vector_store %arg11[%c0_71, %c0_72], %118 {strides = array<i32>} : memref<32x128xbf16, #tpu.memory_space<vmem>>, vector<32x128xbf16>,
    } else {
    }
    %c128_i32 = arith.constant 128 : i32
    %3 = arith.muli %arg1, %c128_i32 : i32
    %4 = tpu.assume_multiple %3, 128 : i32
    %c0 = arith.constant 0 : index
    %c0_1 = arith.constant 0 : index
    %5 = arith.index_cast %4 : i32 to index
    %6 = vector.load %arg2[%c0, %c0_1, %5] : memref<1x32x128xbf16, #tpu.memory_space<vmem>>, vector<1x32x128xbf16>
    %7 = vector.shape_cast %6 : vector<1x32x128xbf16> to vector<32x128xbf16>
    %c0_2 = arith.constant 0 : index
    %c0_3 = arith.constant 0 : index
    %8 = vector.load %arg5[%c0_2, %c0_3] : memref<32x32xbf16, #tpu.memory_space<vmem>>, vector<32x32xbf16>
    %cst = arith.constant dense<0.000000e+00> : vector<32x128xf32>
    %9 = tpu.matmul %8, %7, %cst {dimension_numbers = #tpu.dot_dimension_numbers<[1], [0], [0], [1], [0, 0, 1, 1], [], []>} : vector<32x32xbf16>, vector<32x128xbf16>, vector<32x128xf32> -> vector<32x128xf32>
    %10 = arith.truncf %9 : vector<32x128xf32> to vector<32x128xbf16>
    %c0_4 = arith.constant 0 : index
    %c0_5 = arith.constant 0 : index
    %c0_6 = arith.constant 0 : index
    %11 = vector.load %arg3[%c0_4, %c0_5, %c0_6] : memref<1x1x128xf32, #tpu.memory_space<vmem>>, vector<1x1x128xf32>
    %12 = vector.shape_cast %11 : vector<1x1x128xf32> to vector<1x128xf32>
    %cst_7 = arith.constant 0.000000e+00 : f32
    %13 = vector.broadcast %cst_7 : f32 to vector<1x128xf32>
    %14 = arith.cmpf ogt, %12, %13 : vector<1x128xf32>
    %15 = vector.extract_strided_slice %10 {offsets = [0, 0], sizes = [8, 128], strides = [1, 1]} : vector<32x128xbf16> to vector<8x128xbf16>
    %c0_8 = arith.constant 0 : index
    %c0_9 = arith.constant 0 : index
    %16 = vector.load %arg10[%c0_8, %c0_9] : memref<32x128xbf16, #tpu.memory_space<vmem>>, vector<8x128xbf16>
    %c0_10 = arith.constant 0 : index
    %c0_11 = arith.constant 0 : index
    %17 = vector.load %arg11[%c0_10, %c0_11] : memref<32x128xbf16, #tpu.memory_space<vmem>>, vector<8x128xbf16>
    %cst_12 = arith.constant dense<0.000000e+00> : vector<128x128xf32>
    %18 = tpu.matmul %15, %16, %cst_12 {dimension_numbers = #tpu.dot_dimension_numbers<[0], [0], [1], [1], [0, 1, 1, 1], [], []>} : vector<8x128xbf16>, vector<8x128xbf16>, vector<128x128xf32> -> vector<128x128xf32>
    %cst_13 = arith.constant -1.000000e+30 : f32
    %19 = vector.shape_cast %14 : vector<1x128xi1> to vector<1x128xi1>
    %20 = vector.broadcast %19 : vector<1x128xi1> to vector<128x128xi1>
    %21 = vector.broadcast %cst_13 : f32 to vector<128x128xf32>
    %22 = arith.select %20, %21, %18 : vector<128x128xi1>, vector<128x128xf32>
    %cst_14 = arith.constant dense<0xFF800000> : vector<128xf32>
    %23 = vector.multi_reduction <maximumf>, %22, %cst_14 [1] : vector<128x128xf32> to vector<128xf32>
    %24 = vector.shape_cast %23 : vector<128xf32> to vector<128x1xf32>
    %25 = vector.broadcast %24 : vector<128x1xf32> to vector<128x128xf32>
    %26 = arith.subf %22, %25 : vector<128x128xf32>
    %27 = math.exp %26 : vector<128x128xf32>
    %cst_15 = arith.constant dense<0.000000e+00> : vector<128xf32>
    %28 = vector.multi_reduction <add>, %27, %cst_15 [1] : vector<128x128xf32> to vector<128xf32>
    %29 = vector.shape_cast %28 : vector<128xf32> to vector<128x1xf32>
    %30 = tpu.reciprocal %29 {approx = true} : vector<128x1xf32> -> vector<128x1xf32>
    %31 = vector.broadcast %30 : vector<128x1xf32> to vector<128x128xf32>
    %32 = arith.mulf %27, %31 : vector<128x128xf32>
    %33 = arith.truncf %32 : vector<128x128xf32> to vector<128x128xbf16>
    %cst_16 = arith.constant dense<0.000000e+00> : vector<8x128xf32>
    %34 = tpu.matmul %17, %33, %cst_16 {dimension_numbers = #tpu.dot_dimension_numbers<[1], [1], [0], [0], [0, 0, 1, 0], [], []>} : vector<8x128xbf16>, vector<128x128xbf16>, vector<8x128xf32> -> vector<8x128xf32>
    %c0_17 = arith.constant 0 : index
    %c0_18 = arith.constant 0 : index
    %35 = vector.load %arg12[%c0_17, %c0_18] : memref<32x128xf32, #tpu.memory_space<vmem>>, vector<8x128xf32>
    tpu.vector_store %arg12[%c0_17, %c0_18], %34 {strides = array<i32>} : memref<32x128xf32, #tpu.memory_space<vmem>>, vector<8x128xf32>,
    %36 = vector.extract_strided_slice %10 {offsets = [8, 0], sizes = [8, 128], strides = [1, 1]} : vector<32x128xbf16> to vector<8x128xbf16>
    %c8 = arith.constant 8 : index
    %c0_19 = arith.constant 0 : index
    %37 = vector.load %arg10[%c8, %c0_19] : memref<32x128xbf16, #tpu.memory_space<vmem>>, vector<8x128xbf16>
    %c8_20 = arith.constant 8 : index
    %c0_21 = arith.constant 0 : index
    %38 = vector.load %arg11[%c8_20, %c0_21] : memref<32x128xbf16, #tpu.memory_space<vmem>>, vector<8x128xbf16>
    %cst_22 = arith.constant dense<0.000000e+00> : vector<128x128xf32>
    %39 = tpu.matmul %36, %37, %cst_22 {dimension_numbers = #tpu.dot_dimension_numbers<[0], [0], [1], [1], [0, 1, 1, 1], [], []>} : vector<8x128xbf16>, vector<8x128xbf16>, vector<128x128xf32> -> vector<128x128xf32>
    %cst_23 = arith.constant -1.000000e+30 : f32
    %40 = vector.shape_cast %14 : vector<1x128xi1> to vector<1x128xi1>
    %41 = vector.broadcast %40 : vector<1x128xi1> to vector<128x128xi1>
    %42 = vector.broadcast %cst_23 : f32 to vector<128x128xf32>
    %43 = arith.select %41, %42, %39 : vector<128x128xi1>, vector<128x128xf32>
    %cst_24 = arith.constant dense<0xFF800000> : vector<128xf32>
    %44 = vector.multi_reduction <maximumf>, %43, %cst_24 [1] : vector<128x128xf32> to vector<128xf32>
    %45 = vector.shape_cast %44 : vector<128xf32> to vector<128x1xf32>
    %46 = vector.broadcast %45 : vector<128x1xf32> to vector<128x128xf32>
    %47 = arith.subf %43, %46 : vector<128x128xf32>
    %48 = math.exp %47 : vector<128x128xf32>
    %cst_25 = arith.constant dense<0.000000e+00> : vector<128xf32>
    %49 = vector.multi_reduction <add>, %48, %cst_25 [1] : vector<128x128xf32> to vector<128xf32>
    %50 = vector.shape_cast %49 : vector<128xf32> to vector<128x1xf32>
    %51 = tpu.reciprocal %50 {approx = true} : vector<128x1xf32> -> vector<128x1xf32>
    %52 = vector.broadcast %51 : vector<128x1xf32> to vector<128x128xf32>
    %53 = arith.mulf %48, %52 : vector<128x128xf32>
    %54 = arith.truncf %53 : vector<128x128xf32> to vector<128x128xbf16>
    %cst_26 = arith.constant dense<0.000000e+00> : vector<8x128xf32>
    %55 = tpu.matmul %38, %54, %cst_26 {dimension_numbers = #tpu.dot_dimension_numbers<[1], [1], [0], [0], [0, 0, 1, 0], [], []>} : vector<8x128xbf16>, vector<128x128xbf16>, vector<8x128xf32> -> vector<8x128xf32>
    %c8_27 = arith.constant 8 : index
    %c0_28 = arith.constant 0 : index
    %56 = vector.load %arg12[%c8_27, %c0_28] : memref<32x128xf32, #tpu.memory_space<vmem>>, vector<8x128xf32>
    tpu.vector_store %arg12[%c8_27, %c0_28], %55 {strides = array<i32>} : memref<32x128xf32, #tpu.memory_space<vmem>>, vector<8x128xf32>,
    %57 = vector.extract_strided_slice %10 {offsets = [16, 0], sizes = [8, 128], strides = [1, 1]} : vector<32x128xbf16> to vector<8x128xbf16>
    %c16 = arith.constant 16 : index
    %c0_29 = arith.constant 0 : index
    %58 = vector.load %arg10[%c16, %c0_29] : memref<32x128xbf16, #tpu.memory_space<vmem>>, vector<8x128xbf16>
    %c16_30 = arith.constant 16 : index
    %c0_31 = arith.constant 0 : index
    %59 = vector.load %arg11[%c16_30, %c0_31] : memref<32x128xbf16, #tpu.memory_space<vmem>>, vector<8x128xbf16>
    %cst_32 = arith.constant dense<0.000000e+00> : vector<128x128xf32>
    %60 = tpu.matmul %57, %58, %cst_32 {dimension_numbers = #tpu.dot_dimension_numbers<[0], [0], [1], [1], [0, 1, 1, 1], [], []>} : vector<8x128xbf16>, vector<8x128xbf16>, vector<128x128xf32> -> vector<128x128xf32>
    %cst_33 = arith.constant -1.000000e+30 : f32
    %61 = vector.shape_cast %14 : vector<1x128xi1> to vector<1x128xi1>
    %62 = vector.broadcast %61 : vector<1x128xi1> to vector<128x128xi1>
    %63 = vector.broadcast %cst_33 : f32 to vector<128x128xf32>
    %64 = arith.select %62, %63, %60 : vector<128x128xi1>, vector<128x128xf32>
    %cst_34 = arith.constant dense<0xFF800000> : vector<128xf32>
    %65 = vector.multi_reduction <maximumf>, %64, %cst_34 [1] : vector<128x128xf32> to vector<128xf32>
    %66 = vector.shape_cast %65 : vector<128xf32> to vector<128x1xf32>
    %67 = vector.broadcast %66 : vector<128x1xf32> to vector<128x128xf32>
    %68 = arith.subf %64, %67 : vector<128x128xf32>
    %69 = math.exp %68 : vector<128x128xf32>
    %cst_35 = arith.constant dense<0.000000e+00> : vector<128xf32>
    %70 = vector.multi_reduction <add>, %69, %cst_35 [1] : vector<128x128xf32> to vector<128xf32>
    %71 = vector.shape_cast %70 : vector<128xf32> to vector<128x1xf32>
    %72 = tpu.reciprocal %71 {approx = true} : vector<128x1xf32> -> vector<128x1xf32>
    %73 = vector.broadcast %72 : vector<128x1xf32> to vector<128x128xf32>
    %74 = arith.mulf %69, %73 : vector<128x128xf32>
    %75 = arith.truncf %74 : vector<128x128xf32> to vector<128x128xbf16>
    %cst_36 = arith.constant dense<0.000000e+00> : vector<8x128xf32>
    %76 = tpu.matmul %59, %75, %cst_36 {dimension_numbers = #tpu.dot_dimension_numbers<[1], [1], [0], [0], [0, 0, 1, 0], [], []>} : vector<8x128xbf16>, vector<128x128xbf16>, vector<8x128xf32> -> vector<8x128xf32>
    %c16_37 = arith.constant 16 : index
    %c0_38 = arith.constant 0 : index
    %77 = vector.load %arg12[%c16_37, %c0_38] : memref<32x128xf32, #tpu.memory_space<vmem>>, vector<8x128xf32>
    tpu.vector_store %arg12[%c16_37, %c0_38], %76 {strides = array<i32>} : memref<32x128xf32, #tpu.memory_space<vmem>>, vector<8x128xf32>,
    %78 = vector.extract_strided_slice %10 {offsets = [24, 0], sizes = [8, 128], strides = [1, 1]} : vector<32x128xbf16> to vector<8x128xbf16>
    %c24 = arith.constant 24 : index
    %c0_39 = arith.constant 0 : index
    %79 = vector.load %arg10[%c24, %c0_39] : memref<32x128xbf16, #tpu.memory_space<vmem>>, vector<8x128xbf16>
    %c24_40 = arith.constant 24 : index
    %c0_41 = arith.constant 0 : index
    %80 = vector.load %arg11[%c24_40, %c0_41] : memref<32x128xbf16, #tpu.memory_space<vmem>>, vector<8x128xbf16>
    %cst_42 = arith.constant dense<0.000000e+00> : vector<128x128xf32>
    %81 = tpu.matmul %78, %79, %cst_42 {dimension_numbers = #tpu.dot_dimension_numbers<[0], [0], [1], [1], [0, 1, 1, 1], [], []>} : vector<8x128xbf16>, vector<8x128xbf16>, vector<128x128xf32> -> vector<128x128xf32>
    %cst_43 = arith.constant -1.000000e+30 : f32
    %82 = vector.shape_cast %14 : vector<1x128xi1> to vector<1x128xi1>
    %83 = vector.broadcast %82 : vector<1x128xi1> to vector<128x128xi1>
    %84 = vector.broadcast %cst_43 : f32 to vector<128x128xf32>
    %85 = arith.select %83, %84, %81 : vector<128x128xi1>, vector<128x128xf32>
    %cst_44 = arith.constant dense<0xFF800000> : vector<128xf32>
    %86 = vector.multi_reduction <maximumf>, %85, %cst_44 [1] : vector<128x128xf32> to vector<128xf32>
    %87 = vector.shape_cast %86 : vector<128xf32> to vector<128x1xf32>
    %88 = vector.broadcast %87 : vector<128x1xf32> to vector<128x128xf32>
    %89 = arith.subf %85, %88 : vector<128x128xf32>
    %90 = math.exp %89 : vector<128x128xf32>
    %cst_45 = arith.constant dense<0.000000e+00> : vector<128xf32>
    %91 = vector.multi_reduction <add>, %90, %cst_45 [1] : vector<128x128xf32> to vector<128xf32>
    %92 = vector.shape_cast %91 : vector<128xf32> to vector<128x1xf32>
    %93 = tpu.reciprocal %92 {approx = true} : vector<128x1xf32> -> vector<128x1xf32>
    %94 = vector.broadcast %93 : vector<128x1xf32> to vector<128x128xf32>
    %95 = arith.mulf %90, %94 : vector<128x128xf32>
    %96 = arith.truncf %95 : vector<128x128xf32> to vector<128x128xbf16>
    %cst_46 = arith.constant dense<0.000000e+00> : vector<8x128xf32>
    %97 = tpu.matmul %80, %96, %cst_46 {dimension_numbers = #tpu.dot_dimension_numbers<[1], [1], [0], [0], [0, 0, 1, 0], [], []>} : vector<8x128xbf16>, vector<128x128xbf16>, vector<8x128xf32> -> vector<8x128xf32>
    %c24_47 = arith.constant 24 : index
    %c0_48 = arith.constant 0 : index
    %98 = vector.load %arg12[%c24_47, %c0_48] : memref<32x128xf32, #tpu.memory_space<vmem>>, vector<8x128xf32>
    tpu.vector_store %arg12[%c24_47, %c0_48], %97 {strides = array<i32>} : memref<32x128xf32, #tpu.memory_space<vmem>>, vector<8x128xf32>,
    %c0_49 = arith.constant 0 : index
    %c0_50 = arith.constant 0 : index
    %99 = vector.load %arg12[%c0_49, %c0_50] : memref<32x128xf32, #tpu.memory_space<vmem>>, vector<32x128xf32>
    %100 = arith.truncf %99 : vector<32x128xf32> to vector<32x128xbf16>
    %c0_51 = arith.constant 0 : index
    %c0_52 = arith.constant 0 : index
    %101 = vector.load %arg8[%c0_51, %c0_52] : memref<32x32xbf16, #tpu.memory_space<vmem>>, vector<32x32xbf16>
    %cst_53 = arith.constant dense<0.000000e+00> : vector<32x128xf32>
    %102 = tpu.matmul %101, %100, %cst_53 {dimension_numbers = #tpu.dot_dimension_numbers<[1], [0], [0], [1], [0, 0, 1, 1], [], []>} : vector<32x32xbf16>, vector<32x128xbf16>, vector<32x128xf32> -> vector<32x128xf32>
    %c0_54 = arith.constant 0 : index
    %c0_55 = arith.constant 0 : index
    %c0_56 = arith.constant 0 : index
    %103 = vector.load %arg4[%c0_54, %c0_55, %c0_56] : memref<1x1x128xf32, #tpu.memory_space<vmem>>, vector<1x1x128xf32>
    %104 = vector.shape_cast %103 : vector<1x1x128xf32> to vector<1x128xf32>
    %105 = vector.broadcast %104 : vector<1x128xf32> to vector<32x128xf32>
    %106 = arith.mulf %102, %105 : vector<32x128xf32>
    %c0_57 = arith.constant 0 : index
    %c0_58 = arith.constant 0 : index
    %c0_59 = arith.constant 0 : index
    %107 = vector.load %arg9[%c0_57, %c0_58, %c0_59] : memref<1x32x128xf32, #tpu.memory_space<vmem>>, vector<1x32x128xf32>
    %108 = vector.shape_cast %107 : vector<1x32x128xf32> to vector<32x128xf32>
    %109 = vector.shape_cast %106 : vector<32x128xf32> to vector<1x32x128xf32>
    tpu.vector_store %arg9[%c0_57, %c0_58, %c0_59], %109 {strides = array<i32>} : memref<1x32x128xf32, #tpu.memory_space<vmem>>, vector<1x32x128xf32>,
    return
  }
  func.func @transform_0(%arg0: i32, %arg1: i32) -> (i32, i32, i32) {
    %c0_i32 = arith.constant 0 : i32
    %c0_i32_0 = arith.constant 0 : i32
    %c0_i32_1 = arith.constant 0 : i32
    return %arg0, %c0_i32, %c0_i32_0 : i32, i32, i32
  }
  func.func @transform_1(%arg0: i32, %arg1: i32) -> (i32, i32, i32) {
    %c0_i32 = arith.constant 0 : i32
    %c0_i32_0 = arith.constant 0 : i32
    %c0_i32_1 = arith.constant 0 : i32
    return %arg0, %c0_i32, %c0_i32_0 : i32, i32, i32
  }
  func.func @transform_2(%arg0: i32, %arg1: i32) -> (i32, i32, i32) {
    %c0_i32 = arith.constant 0 : i32
    %c0_i32_0 = arith.constant 0 : i32
    return %arg0, %c0_i32, %arg1 : i32, i32, i32
  }
  func.func @transform_3(%arg0: i32, %arg1: i32) -> (i32, i32) {
    %c0_i32 = arith.constant 0 : i32
    %c0_i32_0 = arith.constant 0 : i32
    %c0_i32_1 = arith.constant 0 : i32
    return %c0_i32, %c0_i32_0 : i32, i32
  }
  func.func @transform_4(%arg0: i32, %arg1: i32) -> (i32, i32) {
    %c0_i32 = arith.constant 0 : i32
    %c0_i32_0 = arith.constant 0 : i32
    %c0_i32_1 = arith.constant 0 : i32
    return %c0_i32, %c0_i32_0 : i32, i32
  }
  func.func @transform_5(%arg0: i32, %arg1: i32) -> (i32, i32) {
    %c0_i32 = arith.constant 0 : i32
    %c0_i32_0 = arith.constant 0 : i32
    %c0_i32_1 = arith.constant 0 : i32
    return %c0_i32, %c0_i32_0 : i32, i32
  }
  func.func @transform_6(%arg0: i32, %arg1: i32) -> (i32, i32) {
    %c0_i32 = arith.constant 0 : i32
    %c0_i32_0 = arith.constant 0 : i32
    %c0_i32_1 = arith.constant 0 : i32
    return %c0_i32, %c0_i32_0 : i32, i32
  }
  func.func @transform_7(%arg0: i32, %arg1: i32) -> (i32, i32, i32) {
    %c0_i32 = arith.constant 0 : i32
    %c0_i32_0 = arith.constant 0 : i32
    return %arg0, %c0_i32, %arg1 : i32, i32, i32
  }
}

</mosaic_0001>

<llo_original>
// kernel: tpu_custom_call.1
$region0: #{tpu_custom_call.1}
  #allocation0 [shape = 'u32[]', space=smem, size = 0x4, offset = 0x4, fixed_abs, tag = 'smem constant byte address 0x4 - core index']
  #allocation1 [shape = 'u32[144,128]{1,0:T(1,128)}', space=vmem, size = 0x12000, scoped, tag = 'internal scratch']
  #allocation2 [shape = 'bf16[32,128]{1,0:T(8,128)(2,1)}', space=vmem, size = 0x2000, scoped, tag = 'scratch operand']
  #allocation3 [shape = 'bf16[32,128]{1,0:T(8,128)(2,1)}', space=vmem, size = 0x2000, scoped, tag = 'scratch operand']
  #allocation4 [shape = 'f32[32,128]{1,0:T(8,128)}', space=vmem, size = 0x4000, scoped, tag = 'scratch operand']
  %s0 = inlined_call_operand.hbm [shape: bf16[2,32,128], index: 0, kind: input, shape index: {}]
  %s1 = inlined_call_operand.hbm [shape: f32[2,1,128], index: 1, kind: input, shape index: {}]
  %s2 = inlined_call_operand.vmem [shape: f32[2,1,128], index: 2, kind: input, shape index: {}]
  %s3 = inlined_call_operand.hbm [shape: bf16[32,32], index: 3, kind: input, shape index: {}]
  %s4 = inlined_call_operand.hbm [shape: bf16[32,32], index: 4, kind: input, shape index: {}]
  %s5 = inlined_call_operand.hbm [shape: bf16[32,32], index: 5, kind: input, shape index: {}]
  %s6 = inlined_call_operand.hbm [shape: bf16[32,32], index: 6, kind: input, shape index: {}]
  %s7 = inlined_call_operand.hbm [shape: f32[2,32,128], index: 7, kind: output, shape index: {}]
  %s8 = sld [smem:[#allocation0]]
  $region89: #{tpu_custom_call.1} parent=0
    _
  %s10 = ssub.s32 1, %s8
  %s11 = scalar_select 0, %s10, %s8
  $region1: #{tpu_custom_call.1} parent=0
    #allocation5 [shape = 'u8[16384]{0}', space=vmem, size = 0x4000, scoped, tag = 'input window, operand 0']
    #allocation6 [shape = 's32[2]{0}', space=sflag, size = 0x8, scoped, tag = 'scoped memory for tpu_custom_call.1']
    #allocation7 [shape = 's32[2]{0}', space=sflag, size = 0x8, scoped, tag = 'scoped memory for tpu_custom_call.1']
    #allocation8 [shape = 'u8[1024]{0}', space=vmem, size = 0x400, scoped, tag = 'input window, operand 1']
    #allocation9 [shape = 's32[2]{0}', space=sflag, size = 0x8, scoped, tag = 'scoped memory for tpu_custom_call.1']
    #allocation10 [shape = 'u8[8192]{0}', space=vmem, size = 0x2000, scoped, tag = 'input window, operand 3, single buffered']
    #allocation11 [shape = 'u8[8192]{0}', space=vmem, size = 0x2000, scoped, tag = 'input window, operand 4, single buffered']
    #allocation12 [shape = 's32[1]{0}', space=sflag, size = 0x4, scoped, tag = 'scoped memory for tpu_custom_call.1']
    #allocation13 [shape = 'u8[8192]{0}', space=vmem, size = 0x2000, scoped, tag = 'input window, operand 5, single buffered']
    #allocation14 [shape = 'u8[8192]{0}', space=vmem, size = 0x2000, scoped, tag = 'input window, operand 6, single buffered']
    #allocation15 [shape = 's32[1]{0}', space=sflag, size = 0x4, scoped, tag = 'scoped memory for tpu_custom_call.1']
    #allocation16 [shape = 'u8[32768]{0}', space=vmem, size = 0x8000, scoped, tag = 'output window, operand 0']
    %12 = vsyncpa [#allocation6], 0
    %s13 = scalar_lea.sflag [#allocation6], 1
    %14 = vsyncpa %s13, 0
    %15 = vsyncpa [#allocation9], 0
    %s16 = scalar_lea.sflag [#allocation9], 1
    %17 = vsyncpa %s16, 0
    %18 = vsyncpa [#allocation12], 0
    %19 = vsyncpa [#allocation15], 0
    %20 = vsyncpa [#allocation7], 0
    %s21 = scalar_lea.sflag [#allocation7], 1
    %22 = vsyncpa %s21, 0
    loop: start=0, step=1, limit=4
    $region2: #{tpu_custom_call.1} parent=1 // loop_pre_header
      _
    $region3: #{tpu_custom_call.1} parent=1 // loop_header
      %s24 = sphi 0, %s28
      %p25 = scmp.ge.s32.totalorder %s24, 4
      %s31 = sphi 0, %s43
      %s32 = sphi 0, %s39
      %s33 = sphi 0, %s31
      %s34 = sphi 0, %s32
      %s35 = sphi 0, %s33
      %s36 = sphi 0, %s34
      %s46 = sphi 0, %s48
      %s49 = sphi 0, %s46
      %s50 = sphi 0, %s49
      %s66 = sphi 0, %s50
      %s72 = sphi 0, %s74
      %s75 = sphi 0, %s72
      %s76 = sphi 0, %s75
      %s92 = sphi 0, %s76
      %s100 = sphi 0, %s102
      %s103 = sphi 0, %s100
      %s104 = sphi 0, %s103
      %s120 = sphi 0, %s104
      %s124 = sphi 0, %s124
      %s126 = sphi 0, %s124
      %s127 = sphi 0, %s126
      %s141 = sphi 0, %s127
      %s145 = sphi 0, %s145
      %s147 = sphi 0, %s145
      %s148 = sphi 0, %s147
      %s162 = sphi 0, %s148
      %s166 = sphi 0, %s166
      %s168 = sphi 0, %s166
      %s169 = sphi 0, %s168
      %s183 = sphi 0, %s169
      %s187 = sphi 0, %s187
      %s189 = sphi 0, %s187
      %s190 = sphi 0, %s189
      %s204 = sphi 0, %s190
      %s212 = sphi 0, %s214
      %s215 = sphi 0, %s212
      %s216 = sphi 0, %s215
      %s232 = sphi 0, %s216
    $region4: #{tpu_custom_call.1} parent=1 // loop_header_branch
      %27 = sbr.rel (%p25) target = $region8
    $region5: #{tpu_custom_call.1} parent=1 // loop_body
      %s29 = ssub.s32 %s24, 1
      %s30 = ssub.s32 %s24, 2
      %s37 = sadd.s32 1, %s32
      %p38 = scmp.ge.s32.totalorder %s37, 1
      %s39 = scalar_select %p38, 0, %s37
      %s40 = sadd.s32 1, %s31
      %s41 = scalar_select %p38, %s40, %s31
      %p42 = scmp.ge.s32.totalorder %s41, 2
      %s43 = scalar_select %p42, 0, %s41
      %s44 = ssub.s32 %s31, %s43
      %p45 = scmp.eq.s32.totalorder %s44, 0
      %s47 = sadd.s32 %s46, 1
      %s48 = scalar_select %p45, %s46, %s47
      %p51 = pneg %p45
      %p52 = scmp.eq.s32.totalorder %s24, 1
      %p53 = por %p51, %p52
      %p54 = scmp.ne.s32.totalorder %s46, %s49
      %p55 = scmp.eq.s32.totalorder %s24, 0
      %p56 = por %p54, %p55
      %p57 = scmp.ne.s32.totalorder %s46, %s49
      %p58 = scmp.eq.s32.totalorder %s29, 1
      %p59 = por %p57, %p58
      %p60 = scmp.ne.s32.totalorder %s49, %s50
      %p61 = scmp.eq.s32.totalorder %s29, 0
      %p62 = por %p60, %p61
      %p63 = scmp.ne.s32.totalorder %s49, %s50
      %p64 = scmp.eq.s32.totalorder %s30, 1
      %p65 = por %p63, %p64
      %p67 = scmp.ne.s32.totalorder %s50, %s66
      %p68 = scmp.eq.s32.totalorder %s30, 0
      %p69 = por %p67, %p68
      %s70 = ssub.s32 %s31, %s43
      %p71 = scmp.eq.s32.totalorder %s70, 0
      %s73 = sadd.s32 %s72, 1
      %s74 = scalar_select %p71, %s72, %s73
      %p77 = pneg %p71
      %p78 = scmp.eq.s32.totalorder %s24, 1
      %p79 = por %p77, %p78
      %p80 = scmp.ne.s32.totalorder %s72, %s75
      %p81 = scmp.eq.s32.totalorder %s24, 0
      %p82 = por %p80, %p81
      %p83 = scmp.ne.s32.totalorder %s72, %s75
      %p84 = scmp.eq.s32.totalorder %s29, 1
      %p85 = por %p83, %p84
      %p86 = scmp.ne.s32.totalorder %s75, %s76
      %p87 = scmp.eq.s32.totalorder %s29, 0
      %p88 = por %p86, %p87
      %p89 = scmp.ne.s32.totalorder %s75, %s76
      %p90 = scmp.eq.s32.totalorder %s30, 1
      %p91 = por %p89, %p90
      %p93 = scmp.ne.s32.totalorder %s76, %s92
      %p94 = scmp.eq.s32.totalorder %s30, 0
      %p95 = por %p93, %p94
      %s96 = ssub.s32 %s31, %s43
      %s97 = ssub.s32 %s32, %s39
      %s98 = sor.u32 %s96, %s97
      %p99 = scmp.eq.s32.totalorder %s98, 0
      %s101 = sadd.s32 %s100, 1
      %s102 = scalar_select %p99, %s100, %s101
      %p105 = pneg %p99
      %p106 = scmp.eq.s32.totalorder %s24, 1
      %p107 = por %p105, %p106
      %p108 = scmp.ne.s32.totalorder %s100, %s103
      %p109 = scmp.eq.s32.totalorder %s24, 0
      %p110 = por %p108, %p109
      %p111 = scmp.ne.s32.totalorder %s100, %s103
      %p112 = scmp.eq.s32.totalorder %s29, 1
      %p113 = por %p111, %p112
      %p114 = scmp.ne.s32.totalorder %s103, %s104
      %p115 = scmp.eq.s32.totalorder %s29, 0
      %p116 = por %p114, %p115
      %p117 = scmp.ne.s32.totalorder %s103, %s104
      %p118 = scmp.eq.s32.totalorder %s30, 1
      %p119 = por %p117, %p118
      %p121 = scmp.ne.s32.totalorder %s104, %s120
      %p122 = scmp.eq.s32.totalorder %s30, 0
      %p123 = por %p121, %p122
      %s125 = sadd.s32 %s124, 1
      %p128 = scmp.eq.s32.totalorder %s24, 1
      %p129 = scmp.ne.s32.totalorder %s124, %s126
      %p130 = scmp.eq.s32.totalorder %s24, 0
      %p131 = por %p129, %p130
      %p132 = scmp.ne.s32.totalorder %s124, %s126
      %p133 = scmp.eq.s32.totalorder %s29, 1
      %p134 = por %p132, %p133
      %p135 = scmp.ne.s32.totalorder %s126, %s127
      %p136 = scmp.eq.s32.totalorder %s29, 0
      %p137 = por %p135, %p136
      %p138 = scmp.ne.s32.totalorder %s126, %s127
      %p139 = scmp.eq.s32.totalorder %s30, 1
      %p140 = por %p138, %p139
      %p142 = scmp.ne.s32.totalorder %s127, %s141
      %p143 = scmp.eq.s32.totalorder %s30, 0
      %p144 = por %p142, %p143
      %s146 = sadd.s32 %s145, 1
      %p149 = scmp.eq.s32.totalorder %s24, 1
      %p150 = scmp.ne.s32.totalorder %s145, %s147
      %p151 = scmp.eq.s32.totalorder %s24, 0
      %p152 = por %p150, %p151
      %p153 = scmp.ne.s32.totalorder %s145, %s147
      %p154 = scmp.eq.s32.totalorder %s29, 1
      %p155 = por %p153, %p154
      %p156 = scmp.ne.s32.totalorder %s147, %s148
      %p157 = scmp.eq.s32.totalorder %s29, 0
      %p158 = por %p156, %p157
      %p159 = scmp.ne.s32.totalorder %s147, %s148
      %p160 = scmp.eq.s32.totalorder %s30, 1
      %p161 = por %p159, %p160
      %p163 = scmp.ne.s32.totalorder %s148, %s162
      %p164 = scmp.eq.s32.totalorder %s30, 0
      %p165 = por %p163, %p164
      %s167 = sadd.s32 %s166, 1
      %p170 = scmp.eq.s32.totalorder %s24, 1
      %p171 = scmp.ne.s32.totalorder %s166, %s168
      %p172 = scmp.eq.s32.totalorder %s24, 0
      %p173 = por %p171, %p172
      %p174 = scmp.ne.s32.totalorder %s166, %s168
      %p175 = scmp.eq.s32.totalorder %s29, 1
      %p176 = por %p174, %p175
      %p177 = scmp.ne.s32.totalorder %s168, %s169
      %p178 = scmp.eq.s32.totalorder %s29, 0
      %p179 = por %p177, %p178
      %p180 = scmp.ne.s32.totalorder %s168, %s169
      %p181 = scmp.eq.s32.totalorder %s30, 1
      %p182 = por %p180, %p181
      %p184 = scmp.ne.s32.totalorder %s169, %s183
      %p185 = scmp.eq.s32.totalorder %s30, 0
      %p186 = por %p184, %p185
      %s188 = sadd.s32 %s187, 1
      %p191 = scmp.eq.s32.totalorder %s24, 1
      %p192 = scmp.ne.s32.totalorder %s187, %s189
      %p193 = scmp.eq.s32.totalorder %s24, 0
      %p194 = por %p192, %p193
      %p195 = scmp.ne.s32.totalorder %s187, %s189
      %p196 = scmp.eq.s32.totalorder %s29, 1
      %p197 = por %p195, %p196
      %p198 = scmp.ne.s32.totalorder %s189, %s190
      %p199 = scmp.eq.s32.totalorder %s29, 0
      %p200 = por %p198, %p199
      %p201 = scmp.ne.s32.totalorder %s189, %s190
      %p202 = scmp.eq.s32.totalorder %s30, 1
      %p203 = por %p201, %p202
      %p205 = scmp.ne.s32.totalorder %s190, %s204
      %p206 = scmp.eq.s32.totalorder %s30, 0
      %p207 = por %p205, %p206
      %s208 = ssub.s32 %s31, %s43
      %s209 = ssub.s32 %s32, %s39
      %s210 = sor.u32 %s208, %s209
      %p211 = scmp.eq.s32.totalorder %s210, 0
      %s213 = sadd.s32 %s212, 1
      %s214 = scalar_select %p211, %s212, %s213
      %p217 = pneg %p211
      %p218 = scmp.eq.s32.totalorder %s24, 1
      %p219 = por %p217, %p218
      %p220 = scmp.ne.s32.totalorder %s212, %s215
      %p221 = scmp.eq.s32.totalorder %s24, 0
      %p222 = por %p220, %p221
      %p223 = scmp.ne.s32.totalorder %s212, %s215
      %p224 = scmp.eq.s32.totalorder %s29, 1
      %p225 = por %p223, %p224
      %p226 = scmp.ne.s32.totalorder %s215, %s216
      %p227 = scmp.eq.s32.totalorder %s29, 0
      %p228 = por %p226, %p227
      %p229 = scmp.ne.s32.totalorder %s215, %s216
      %p230 = scmp.eq.s32.totalorder %s30, 1
      %p231 = por %p229, %p230
      %p233 = scmp.ne.s32.totalorder %s216, %s232
      %p234 = scmp.eq.s32.totalorder %s30, 0
      %p235 = por %p233, %p234
      %p236 = scmp.le.s32.totalorder 1, %s24
      %p237 = scmp.lt.s32.totalorder %s24, 3
      %p238 = pnand %p236, %p237
      %p239 = pneg %p238
      // Predicated region
      $region9: #{tpu_custom_call.1} parent=5 // pred_check
        _
      $region10: #{tpu_custom_call.1} parent=5 // pred_check_branch
        %241 = sbr.rel (%p238) target = $region12
      $region11: #{tpu_custom_call.1} parent=5 // pred_region
        %s242 = ssub.s32 %s24, 1
        // Predicated region
        $region13: #{tpu_custom_call.1} parent=11 // pred_check
          %p243 = pneg %p137
        $region14: #{tpu_custom_call.1} parent=11 // pred_check_branch
          %245 = sbr.rel (%p243) target = $region16
        $region15: #{tpu_custom_call.1} parent=11 // pred_region
          %s247 = ssub.s32 256, 256
          %248 = vsyncadd [#allocation9], %s247
          %s249 = sshll.u32 [#allocation10], 4
          %s250 = int_to_ptr.vmem [resolvable:$true] %s249
          %255 = dma.hbm_to_vmem [thread:$0]  %s3, 256, %s250, [#allocation9], 64, 64, 4
        $region16: #{tpu_custom_call.1} parent=11 // pred_fallthru
          _
        // Predicated region
        $region17: #{tpu_custom_call.1} parent=11 // pred_check
          %p256 = pneg %p158
        $region18: #{tpu_custom_call.1} parent=11 // pred_check_branch
          %258 = sbr.rel (%p256) target = $region20
        $region19: #{tpu_custom_call.1} parent=11 // pred_region
          %s260 = ssub.s32 256, 256
          %261 = vsyncadd [#allocation12], %s260
          %s262 = sshll.u32 [#allocation11], 4
          %s263 = int_to_ptr.vmem [resolvable:$true] %s262
          %268 = dma.hbm_to_vmem [thread:$0]  %s4, 256, %s263, [#allocation12], 64, 64, 4
        $region20: #{tpu_custom_call.1} parent=11 // pred_fallthru
          _
        // Predicated region
        $region21: #{tpu_custom_call.1} parent=11 // pred_check
          %p269 = pneg %p179
        $region22: #{tpu_custom_call.1} parent=11 // pred_check_branch
          %271 = sbr.rel (%p269) target = $region24
        $region23: #{tpu_custom_call.1} parent=11 // pred_region
          %s273 = ssub.s32 256, 256
          %274 = vsyncadd [#allocation12], %s273
          %s275 = sshll.u32 [#allocation13], 4
          %s276 = int_to_ptr.vmem [resolvable:$true] %s275
          %281 = dma.hbm_to_vmem [thread:$0]  %s5, 256, %s276, [#allocation12], 64, 64, 4
        $region24: #{tpu_custom_call.1} parent=11 // pred_fallthru
          _
        // Predicated region
        $region25: #{tpu_custom_call.1} parent=11 // pred_check
          %p282 = pneg %p200
        $region26: #{tpu_custom_call.1} parent=11 // pred_check_branch
          %284 = sbr.rel (%p282) target = $region28
        $region27: #{tpu_custom_call.1} parent=11 // pred_region
          %s286 = ssub.s32 256, 256
          %287 = vsyncadd [#allocation15], %s286
          %s288 = sshll.u32 [#allocation14], 4
          %s289 = int_to_ptr.vmem [resolvable:$true] %s288
          %294 = dma.hbm_to_vmem [thread:$0]  %s6, 256, %s289, [#allocation15], 64, 64, 4
        $region28: #{tpu_custom_call.1} parent=11 // pred_fallthru
          _
      $region12: #{tpu_custom_call.1} parent=5 // pred_fallthru
        _
      %p295 = scmp.lt.s32.totalorder %s24, 2
      // Predicated region
      $region29: #{tpu_custom_call.1} parent=5 // pred_check
        %p296 = pneg %p295
      $region30: #{tpu_custom_call.1} parent=5 // pred_check_branch
        %298 = sbr.rel (%p296) target = $region32
      $region31: #{tpu_custom_call.1} parent=5 // pred_region
        // Predicated region
        $region33: #{tpu_custom_call.1} parent=31 // pred_check
          %p299 = pneg %p56
        $region34: #{tpu_custom_call.1} parent=31 // pred_check_branch
          %301 = sbr.rel (%p299) target = $region36
        $region35: #{tpu_custom_call.1} parent=31 // pred_region
          %s302 = sand.u32 %s46, 1
          %s303 = scalar_lea.sflag [#allocation6], %s302
          %s304 = sand.u32 %s46, 1
          %s305 = smul.addr %s304, 16
          %s306 = scalar_lea.vmem [#allocation5], %s305
          %s308 = ssub.s32 256, 256
          %309 = vsyncadd %s303, %s308
          %s310 = smul.addr %s31, 4
          %s311 = smul.addr %s310, 64
          %s312 = scalar_lea.hbm %s0, %s311
          %s313 = sshll.u32 %s306, 4
          %s314 = int_to_ptr.vmem [resolvable:$true] %s313
          %319 = dma.hbm_to_vmem [thread:$0]  %s312, 256, %s314, %s303, 64, 64, 4
        $region36: #{tpu_custom_call.1} parent=31 // pred_fallthru
          _
        // Predicated region
        $region37: #{tpu_custom_call.1} parent=31 // pred_check
          %p320 = pneg %p82
        $region38: #{tpu_custom_call.1} parent=31 // pred_check_branch
          %322 = sbr.rel (%p320) target = $region40
        $region39: #{tpu_custom_call.1} parent=31 // pred_region
          %s323 = sand.u32 %s24, 1
          %s324 = scalar_lea.sflag [#allocation9], %s323
          %s325 = sand.u32 %s72, 1
          %s326 = scalar_lea.vmem [#allocation8], %s325
          %s328 = ssub.s32 16, 16
          %329 = vsyncadd %s324, %s328
          %s330 = smul.addr %s31, 16
          %s331 = scalar_lea.hbm %s1, %s330
          %s333 = sshll.u32 %s326, 4
          %s334 = int_to_ptr.vmem [resolvable:$true] %s333
          %336 = dma.hbm_to_vmem [thread:$0]  %s331, 16, %s334, %s324
        $region40: #{tpu_custom_call.1} parent=31 // pred_fallthru
          _
        // Predicated region
        $region41: #{tpu_custom_call.1} parent=31 // pred_check
          %p337 = pneg %p110
        $region42: #{tpu_custom_call.1} parent=31 // pred_check_branch
          %339 = sbr.rel (%p337) target = $region44
        $region43: #{tpu_custom_call.1} parent=31 // pred_region
          %p340 = scmp.lt.s32.totalorder %s31, 1
          %s341 = scalar_select %p340, %s31, 1
          %p342 = scmp.lt.s32.totalorder %s32, 0
          %s343 = scalar_select %p342, %s32, 0
          %s344 = sadd.s32 %s343, %s341
          %s345 = scalar_lea.vmem %s2, %s344
        $region44: #{tpu_custom_call.1} parent=31 // pred_fallthru
          _
      $region32: #{tpu_custom_call.1} parent=5 // pred_fallthru
        _
      %p346 = scmp.le.s32.totalorder 1, %s24
      %p347 = scmp.lt.s32.totalorder %s24, 3
      %p348 = pnand %p346, %p347
      %p349 = pneg %p348
      // Predicated region
      $region45: #{tpu_custom_call.1} parent=5 // pred_check
        _
      $region46: #{tpu_custom_call.1} parent=5 // pred_check_branch
        %351 = sbr.rel (%p348) target = $region48
      $region47: #{tpu_custom_call.1} parent=5 // pred_region
        %s352 = ssub.s32 %s24, 1
        %s353 = sand.u32 %s49, 1
        %s354 = scalar_lea.sflag [#allocation6], %s353
        %s355 = sand.u32 %s49, 1
        %s356 = smul.addr %s355, 16
        %s357 = scalar_lea.vmem [#allocation5], %s356
        // Predicated region
        $region49: #{tpu_custom_call.1} parent=47 // pred_check
          %p358 = pneg %p62
        $region50: #{tpu_custom_call.1} parent=47 // pred_check_branch
          %360 = sbr.rel (%p358) target = $region52
        $region51: #{tpu_custom_call.1} parent=47 // pred_region
          %361 = dma.done %s354, 256
        $region52: #{tpu_custom_call.1} parent=47 // pred_fallthru
          _
        %s362 = sand.u32 %s29, 1
        %s363 = scalar_lea.sflag [#allocation9], %s362
        %s364 = sand.u32 %s75, 1
        %s365 = scalar_lea.vmem [#allocation8], %s364
        // Predicated region
        $region53: #{tpu_custom_call.1} parent=47 // pred_check
          %p366 = pneg %p88
        $region54: #{tpu_custom_call.1} parent=47 // pred_check_branch
          %368 = sbr.rel (%p366) target = $region56
        $region55: #{tpu_custom_call.1} parent=47 // pred_region
          %369 = dma.done %s363, 16
        $region56: #{tpu_custom_call.1} parent=47 // pred_fallthru
          _
        // Predicated region
        $region57: #{tpu_custom_call.1} parent=47 // pred_check
          %p370 = pneg %p137
        $region58: #{tpu_custom_call.1} parent=47 // pred_check_branch
          %372 = sbr.rel (%p370) target = $region60
        $region59: #{tpu_custom_call.1} parent=47 // pred_region
          %373 = dma.done [#allocation9], 256
        $region60: #{tpu_custom_call.1} parent=47 // pred_fallthru
          _
        // Predicated region
        $region61: #{tpu_custom_call.1} parent=47 // pred_check
          %p374 = pneg %p158
        $region62: #{tpu_custom_call.1} parent=47 // pred_check_branch
          %376 = sbr.rel (%p374) target = $region64
        $region63: #{tpu_custom_call.1} parent=47 // pred_region
          %377 = dma.done [#allocation12], 256
        $region64: #{tpu_custom_call.1} parent=47 // pred_fallthru
          _
        // Predicated region
        $region65: #{tpu_custom_call.1} parent=47 // pred_check
          %p378 = pneg %p179
        $region66: #{tpu_custom_call.1} parent=47 // pred_check_branch
          %380 = sbr.rel (%p378) target = $region68
        $region67: #{tpu_custom_call.1} parent=47 // pred_region
          %381 = dma.done [#allocation12], 256
        $region68: #{tpu_custom_call.1} parent=47 // pred_fallthru
          _
        // Predicated region
        $region69: #{tpu_custom_call.1} parent=47 // pred_check
          %p382 = pneg %p200
        $region70: #{tpu_custom_call.1} parent=47 // pred_check_branch
          %384 = sbr.rel (%p382) target = $region72
        $region71: #{tpu_custom_call.1} parent=47 // pred_region
          %385 = dma.done [#allocation15], 256
        $region72: #{tpu_custom_call.1} parent=47 // pred_fallthru
          _
        %s386 = sand.u32 %s49, 1
        %s387 = scalar_lea.sflag [#allocation6], %s386
        %s388 = sand.u32 %s49, 1
        %s389 = smul.addr %s388, 16
        %s390 = scalar_lea.vmem [#allocation5], %s389
        %p391 = pneg %p62
        %p392 = pneg %p59
        %s393 = sand.u32 %s29, 1
        %s394 = scalar_lea.sflag [#allocation9], %s393
        %s395 = sand.u32 %s75, 1
        %s396 = scalar_lea.vmem [#allocation8], %s395
        %p397 = pneg %p88
        %p398 = pneg %p85
        %p399 = scmp.lt.s32.totalorder %s33, 1
        %s400 = scalar_select %p399, %s33, 1
        %p401 = scmp.lt.s32.totalorder %s34, 0
        %s402 = scalar_select %p401, %s34, 0
        %s403 = sadd.s32 %s402, %s400
        %s404 = scalar_lea.vmem %s2, %s403
        %p405 = pneg %p116
        %p406 = pneg %p113
        %p407 = pneg %p137
        %p408 = pneg %p134
        %p409 = pneg %p158
        %p410 = pneg %p155
        %p411 = pneg %p179
        %p412 = pneg %p176
        %p413 = pneg %p200
        %p414 = pneg %p197
        %p415 = pneg %p228
        %p416 = pneg %p225
        %s417 = sand.u32 %s215, 1
        %s418 = scalar_lea.sflag [#allocation7], %s417
        %s419 = sand.u32 %s215, 1
        %s420 = smul.addr %s419, 32
        %s421 = scalar_lea.vmem [#allocation16], %s420
        %p422 = scmp.lt.s32.totalorder %s33, 1
        %s423 = scalar_select %p422, %s33, 1
        %p424 = scmp.lt.s32.totalorder %s34, 0
        %s425 = scalar_select %p424, %s34, 0
        %s426 = sadd.s32 %s425, %s423
        %s427 = scalar_lea.vmem %s2, %s426
        %p429 = scmp.eq.s32.totalorder %s34, 0
        // Predicated region
        $region73: #{tpu_custom_call.1} parent=47 // pred_check
          %p430 = pneg %p429
        $region74: #{tpu_custom_call.1} parent=47 // pred_check_branch
          %432 = sbr.rel (%p430) target = $region76
        $region75: #{tpu_custom_call.1} parent=47 // pred_region
          %v433 = vld [vmem:[%s357] sm:$0xf]
          %v434 = vld [vmem:[%s357 + $0x4] sm:$0xf]
          %v435 = vld [vmem:[%s357 + $0x8] sm:$0xf]
          %v436 = vld [vmem:[%s357 + $0xc] sm:$0xf]
          %v437 = vld [vmem:[#allocation11] sm:$0xf]
          %v438 = vld [vmem:[#allocation11 + $0x4] sm:$0xf]
          %v439 = vld [vmem:[#allocation11 + $0x8] sm:$0xf]
          %v440 = vld [vmem:[#allocation11 + $0xc] sm:$0xf]
          %v445 = vunpack.c.l.b16 %v437
          %v446 = vunpack.c.l.b16 %v438
          %v447 = vunpack.c.l.b16 %v439
          %v448 = vunpack.c.l.b16 %v440
          %v449 = vpack.c.b16 %v446, %v445
          %v450 = vpack.c.b16 %v448, %v447
          %v455 = vunpack.c.l.b16 %v433
          %v456 = vunpack.c.l.b16 %v434
          %v457 = vunpack.c.l.b16 %v435
          %v458 = vunpack.c.l.b16 %v436
          %v459 = vpack.c.b16 %v456, %v455
          %v460 = vpack.c.b16 %v458, %v457
          %vm463 = vcmask 261120
          %v465 = vsel %vm463, %v449, 0
          %v468 = vsel %vm463, %v450, 0
          %470 = vmatprep.subr.bf16.mxu0 0
          %471 = vmatpush1.bf16.msra.mxu0 0
          %472 = vmatprep.subr.bf16.mxu0 0
          %473 = vmatpush1.bf16.msra.mxu0 0
          %474 = vmatprep.subr.bf16.mxu0 0
          %475 = vmatpush1.bf16.msra.mxu0 0
          %476 = vmatprep.subr.bf16.mxu0 0
          %477 = vmatpush1.bf16.msra.mxu0 0
          %478 = vmatprep.subr.bf16.mxu0 0
          %479 = vmatpush1.bf16.msra.mxu0 0
          %480 = vmatprep.subr.bf16.mxu0 0
          %481 = vmatpush1.bf16.msra.mxu0 0
          %482 = vmatprep.subr.bf16.mxu0 0
          %483 = vmatpush1.bf16.msra.mxu0 %v460
          %484 = vmatprep.subr.bf16.mxu0 0
          %485 = vmatpush1.bf16.msra.mxu0 %v459
          %486 = vmatprep.subr.bf16.mxu0 0
          %487 = vmatpush2.bf16.msra.mxu0 0
          %488 = vmatprep.subr.bf16.mxu0 0
          %489 = vmatpush2.bf16.msra.mxu0 0
          %490 = vmatprep.subr.bf16.mxu0 0
          %491 = vmatpush2.bf16.msra.mxu0 0
          %492 = vmatprep.subr.bf16.mxu0 0
          %493 = vmatpush2.bf16.msra.mxu0 0
          %494 = vmatprep.subr.bf16.mxu0 0
          %495 = vmatpush2.bf16.msra.mxu0 0
          %496 = vmatprep.subr.bf16.mxu0 0
          %497 = vmatpush2.bf16.msra.mxu0 0
          %498 = vmatprep.subr.bf16.mxu0 0
          %499 = vmatpush2.bf16.msra.mxu0 0
          %500 = vmatprep.subr.bf16.mxu0 0
          %501 = vmatpush2.bf16.msra.mxu0 0
          %502 = vmatprep.mubr.bf16.mxu0 0
          %503 = vmatmul.mubr.bf16.gmra.mxu0 %v465
          %v504 = vpop.f32.mrf.mxu0
          %v505 = vadd.f32 0.0, %v504
          %v506 = vpop.f32.mrf.mxu0
          %v507 = vpop.f32.mrf.mxu0
          %v508 = vadd.f32 0.0, %v507
          %v509 = vpop.f32.mrf.mxu0
          %510 = vmatprep.mubr.bf16.mxu0 0
          %511 = vmatmul.mubr.bf16.gmra.mxu0 %v468
          %v512 = vpop.f32.mrf.mxu0
          %v513 = vadd.f32 0.0, %v512
          %v514 = vpop.f32.mrf.mxu0
          %v515 = vpop.f32.mrf.mxu0
          %v516 = vadd.f32 0.0, %v515
          %v517 = vpop.f32.mrf.mxu0
          %518 = vdwg.mxu0
          %v519 = vpack.c.bf16 %v508, %v505
          %v520 = vpack.c.bf16 %v516, %v513
          %v523 = vunpack.c.l.b16 %v519
          %v524 = vunpack.c.h.b16 %v519
          %v525 = vunpack.c.l.b16 %v520
          %v526 = vunpack.c.h.b16 %v520
          %v527 = vpack.c.b16 %v523, %v523
          %v528 = vpack.c.b16 %v524, %v524
          %v529 = vpack.c.b16 %v525, %v525
          %v530 = vpack.c.b16 %v526, %v526
          %535 = vst [vmem:[#allocation2] sm:$0xf] %v527
          %536 = vst [vmem:[#allocation2 + $0x4] sm:$0xf] %v528
          %537 = vst [vmem:[#allocation2 + $0x8] sm:$0xf] %v529
          %538 = vst [vmem:[#allocation2 + $0xc] sm:$0xf] %v530
          %v539 = vld [vmem:[#allocation13] sm:$0xf]
          %v540 = vld [vmem:[#allocation13 + $0x4] sm:$0xf]
          %v541 = vld [vmem:[#allocation13 + $0x8] sm:$0xf]
          %v542 = vld [vmem:[#allocation13 + $0xc] sm:$0xf]
          %v547 = vunpack.c.l.b16 %v539
          %v548 = vunpack.c.l.b16 %v540
          %v549 = vunpack.c.l.b16 %v541
          %v550 = vunpack.c.l.b16 %v542
          %v551 = vpack.c.b16 %v548, %v547
          %v552 = vpack.c.b16 %v550, %v549
          %v554 = vsel %vm463, %v551, 0
          %v557 = vsel %vm463, %v552, 0
          %559 = vmatprep.subr.bf16.mxu0 0
          %560 = vmatpush1.bf16.msra.mxu0 0
          %561 = vmatprep.subr.bf16.mxu0 0
          %562 = vmatpush1.bf16.msra.mxu0 0
          %563 = vmatprep.subr.bf16.mxu0 0
          %564 = vmatpush1.bf16.msra.mxu0 0
          %565 = vmatprep.subr.bf16.mxu0 0
          %566 = vmatpush1.bf16.msra.mxu0 0
          %567 = vmatprep.subr.bf16.mxu0 0
          %568 = vmatpush1.bf16.msra.mxu0 0
          %569 = vmatprep.subr.bf16.mxu0 0
          %570 = vmatpush1.bf16.msra.mxu0 0
          %571 = vmatprep.subr.bf16.mxu0 0
          %572 = vmatpush1.bf16.msra.mxu0 %v460
          %573 = vmatprep.subr.bf16.mxu0 0
          %574 = vmatpush1.bf16.msra.mxu0 %v459
          %575 = vmatprep.subr.bf16.mxu0 0
          %576 = vmatpush2.bf16.msra.mxu0 0
          %577 = vmatprep.subr.bf16.mxu0 0
          %578 = vmatpush2.bf16.msra.mxu0 0
          %579 = vmatprep.subr.bf16.mxu0 0
          %580 = vmatpush2.bf16.msra.mxu0 0
          %581 = vmatprep.subr.bf16.mxu0 0
          %582 = vmatpush2.bf16.msra.mxu0 0
          %583 = vmatprep.subr.bf16.mxu0 0
          %584 = vmatpush2.bf16.msra.mxu0 0
          %585 = vmatprep.subr.bf16.mxu0 0
          %586 = vmatpush2.bf16.msra.mxu0 0
          %587 = vmatprep.subr.bf16.mxu0 0
          %588 = vmatpush2.bf16.msra.mxu0 0
          %589 = vmatprep.subr.bf16.mxu0 0
          %590 = vmatpush2.bf16.msra.mxu0 0
          %591 = vmatprep.mubr.bf16.mxu0 0
          %592 = vmatmul.mubr.bf16.gmra.mxu0 %v554
          %v593 = vpop.f32.mrf.mxu0
          %v594 = vadd.f32 0.0, %v593
          %v595 = vpop.f32.mrf.mxu0
          %v596 = vpop.f32.mrf.mxu0
          %v597 = vadd.f32 0.0, %v596
          %v598 = vpop.f32.mrf.mxu0
          %599 = vmatprep.mubr.bf16.mxu0 0
          %600 = vmatmul.mubr.bf16.gmra.mxu0 %v557
          %v601 = vpop.f32.mrf.mxu0
          %v602 = vadd.f32 0.0, %v601
          %v603 = vpop.f32.mrf.mxu0
          %v604 = vpop.f32.mrf.mxu0
          %v605 = vadd.f32 0.0, %v604
          %v606 = vpop.f32.mrf.mxu0
          %607 = vdwg.mxu0
          %v608 = vpack.c.bf16 %v597, %v594
          %v609 = vpack.c.bf16 %v605, %v602
          %v612 = vunpack.c.l.b16 %v608
          %v613 = vunpack.c.h.b16 %v608
          %v614 = vunpack.c.l.b16 %v609
          %v615 = vunpack.c.h.b16 %v609
          %v616 = vpack.c.b16 %v612, %v612
          %v617 = vpack.c.b16 %v613, %v613
          %v618 = vpack.c.b16 %v614, %v614
          %v619 = vpack.c.b16 %v615, %v615
          %624 = vst [vmem:[#allocation3] sm:$0xf] %v616
          %625 = vst [vmem:[#allocation3 + $0x4] sm:$0xf] %v617
          %626 = vst [vmem:[#allocation3 + $0x8] sm:$0xf] %v618
          %627 = vst [vmem:[#allocation3 + $0xc] sm:$0xf] %v619
        $region76: #{tpu_custom_call.1} parent=47 // pred_fallthru
          _
        %s628 = smul.u32 %s34, 128
        %s629 = sshra.s32 %s628, 7
        %s630 = sand.u32 %s628, 127
        %s631 = smul.addr %s629, 4
        %s632 = scalar_lea.vmem %s357, %s631 [#allocation5]
        %v633 = vld [vmem:[%s632] sm:$0xf]
        %v634 = vld [vmem:[%s632 + $0x4] sm:$0xf]
        %v635 = vld [vmem:[%s632 + $0x8] sm:$0xf]
        %v636 = vld [vmem:[%s632 + $0xc] sm:$0xf]
        %v637 = vld [vmem:[#allocation10] sm:$0xf]
        %v638 = vld [vmem:[#allocation10 + $0x4] sm:$0xf]
        %v639 = vld [vmem:[#allocation10 + $0x8] sm:$0xf]
        %v640 = vld [vmem:[#allocation10 + $0xc] sm:$0xf]
        %v645 = vunpack.c.l.b16 %v637
        %v646 = vunpack.c.l.b16 %v638
        %v647 = vunpack.c.l.b16 %v639
        %v648 = vunpack.c.l.b16 %v640
        %v649 = vpack.c.b16 %v646, %v645
        %v650 = vpack.c.b16 %v648, %v647
        %v655 = vunpack.c.l.b16 %v633
        %v656 = vunpack.c.l.b16 %v634
        %v657 = vunpack.c.l.b16 %v635
        %v658 = vunpack.c.l.b16 %v636
        %v659 = vpack.c.b16 %v656, %v655
        %v660 = vpack.c.b16 %v658, %v657
        %vm663 = vcmask 261120
        %v665 = vsel %vm663, %v649, 0
        %v668 = vsel %vm663, %v650, 0
        %670 = vmatprep.subr.bf16.mxu0 0
        %671 = vmatpush1.bf16.msra.mxu0 0
        %672 = vmatprep.subr.bf16.mxu0 0
        %673 = vmatpush1.bf16.msra.mxu0 0
        %674 = vmatprep.subr.bf16.mxu0 0
        %675 = vmatpush1.bf16.msra.mxu0 0
        %676 = vmatprep.subr.bf16.mxu0 0
        %677 = vmatpush1.bf16.msra.mxu0 0
        %678 = vmatprep.subr.bf16.mxu0 0
        %679 = vmatpush1.bf16.msra.mxu0 0
        %680 = vmatprep.subr.bf16.mxu0 0
        %681 = vmatpush1.bf16.msra.mxu0 0
        %682 = vmatprep.subr.bf16.mxu0 0
        %683 = vmatpush1.bf16.msra.mxu0 %v660
        %684 = vmatprep.subr.bf16.mxu0 0
        %685 = vmatpush1.bf16.msra.mxu0 %v659
        %686 = vmatprep.subr.bf16.mxu0 0
        %687 = vmatpush2.bf16.msra.mxu0 0
        %688 = vmatprep.subr.bf16.mxu0 0
        %689 = vmatpush2.bf16.msra.mxu0 0
        %690 = vmatprep.subr.bf16.mxu0 0
        %691 = vmatpush2.bf16.msra.mxu0 0
        %692 = vmatprep.subr.bf16.mxu0 0
        %693 = vmatpush2.bf16.msra.mxu0 0
        %694 = vmatprep.subr.bf16.mxu0 0
        %695 = vmatpush2.bf16.msra.mxu0 0
        %696 = vmatprep.subr.bf16.mxu0 0
        %697 = vmatpush2.bf16.msra.mxu0 0
        %698 = vmatprep.subr.bf16.mxu0 0
        %699 = vmatpush2.bf16.msra.mxu0 0
        %700 = vmatprep.subr.bf16.mxu0 0
        %701 = vmatpush2.bf16.msra.mxu0 0
        %702 = vmatprep.mubr.bf16.mxu0 0
        %703 = vmatmul.mubr.bf16.gmra.mxu0 %v665
        %v704 = vpop.f32.mrf.mxu0
        %v705 = vadd.f32 0.0, %v704
        %v706 = vpop.f32.mrf.mxu0
        %v707 = vpop.f32.mrf.mxu0
        %v708 = vadd.f32 0.0, %v707
        %v709 = vpop.f32.mrf.mxu0
        %710 = vmatprep.mubr.bf16.mxu0 0
        %711 = vmatmul.mubr.bf16.gmra.mxu0 %v668
        %v712 = vpop.f32.mrf.mxu0
        %v713 = vadd.f32 0.0, %v712
        %v714 = vpop.f32.mrf.mxu0
        %v715 = vpop.f32.mrf.mxu0
        %v716 = vadd.f32 0.0, %v715
        %v717 = vpop.f32.mrf.mxu0
        %718 = vdwg.mxu0
        %v719 = vpack.c.bf16 %v708, %v705
        %v720 = vpack.c.bf16 %v716, %v713
        %v721 = vld [vmem:[%s365] sm:$0x1]
        %vm722 = vcmp.gt.f32.partialorder %v721, 0.0
        %v723 = vld [vmem:[#allocation2] sm:$0xf]
        %v724 = vld [vmem:[#allocation3] sm:$0xf]
        %725 = vxpose.xlu0.c.b16.start [1/8] %v719, 128
        %726 = vxpose.xlu0.c.b16.cont [2/8] 0, 128
        %727 = vxpose.xlu0.c.b16.cont [3/8] 0, 128
        %728 = vxpose.xlu0.c.b16.cont [4/8] 0, 128
        %729 = vxpose.xlu0.c.b16.cont [5/8] 0, 128
        %730 = vxpose.xlu0.c.b16.cont [6/8] 0, 128
        %731 = vxpose.xlu0.c.b16.cont [7/8] 0, 128
        %732 = vxpose.xlu0.c.b16.end [8/8] 0, 128
        %v733 = vpop.trf.xlu0
        %v734 = vpop.trf.xlu0
        %v735 = vpop.trf.xlu0
        %v736 = vpop.trf.xlu0
        %v737 = vpop.trf.xlu0
        %v738 = vpop.trf.xlu0
        %v739 = vpop.trf.xlu0
        %v740 = vpop.trf.xlu0
        %vm741 = vcmask 64512
        %v743 = vsel %vm741, %v733, 0
        %v746 = vsel %vm741, %v734, 0
        %v749 = vsel %vm741, %v735, 0
        %v752 = vsel %vm741, %v736, 0
        %v755 = vsel %vm741, %v737, 0
        %v758 = vsel %vm741, %v738, 0
        %v761 = vsel %vm741, %v739, 0
        %v764 = vsel %vm741, %v740, 0
        %vm766 = vcmask 1043456
        %v768 = vsel %vm766, %v723, 0
        %770 = vmatprep.subr.bf16.mxu0 0
        %771 = vmatpush1.bf16.msra.mxu0 0
        %772 = vmatprep.subr.bf16.mxu0 0
        %773 = vmatpush1.bf16.msra.mxu0 0
        %774 = vmatprep.subr.bf16.mxu0 0
        %775 = vmatpush1.bf16.msra.mxu0 0
        %776 = vmatprep.subr.bf16.mxu0 0
        %777 = vmatpush1.bf16.msra.mxu0 0
        %778 = vmatprep.subr.bf16.mxu0 0
        %779 = vmatpush1.bf16.msra.mxu0 0
        %780 = vmatprep.subr.bf16.mxu0 0
        %781 = vmatpush1.bf16.msra.mxu0 0
        %782 = vmatprep.subr.bf16.mxu0 0
        %783 = vmatpush1.bf16.msra.mxu0 0
        %784 = vmatprep.subr.bf16.mxu0 0
        %785 = vmatpush1.bf16.msra.mxu0 %v768
        %786 = vmatprep.subr.bf16.mxu0 0
        %787 = vmatpush2.bf16.msra.mxu0 0
        %788 = vmatprep.subr.bf16.mxu0 0
        %789 = vmatpush2.bf16.msra.mxu0 0
        %790 = vmatprep.subr.bf16.mxu0 0
        %791 = vmatpush2.bf16.msra.mxu0 0
        %792 = vmatprep.subr.bf16.mxu0 0
        %793 = vmatpush2.bf16.msra.mxu0 0
        %794 = vmatprep.subr.bf16.mxu0 0
        %795 = vmatpush2.bf16.msra.mxu0 0
        %796 = vmatprep.subr.bf16.mxu0 0
        %797 = vmatpush2.bf16.msra.mxu0 0
        %798 = vmatprep.subr.bf16.mxu0 0
        %799 = vmatpush2.bf16.msra.mxu0 0
        %800 = vmatprep.subr.bf16.mxu0 0
        %801 = vmatpush2.bf16.msra.mxu0 0
        %802 = vmatprep.mubr.bf16.mxu0 0
        %803 = vmatmul.mubr.bf16.gmra.mxu0 %v743
        %v804 = vpop.f32.mrf.mxu0
        %v805 = vadd.f32 0.0, %v804
        %v806 = vpop.f32.mrf.mxu0
        %v807 = vpop.f32.mrf.mxu0
        %v808 = vadd.f32 0.0, %v807
        %v809 = vpop.f32.mrf.mxu0
        %810 = vmatprep.mubr.bf16.mxu0 0
        %811 = vmatmul.mubr.bf16.gmra.mxu0 %v746
        %v812 = vpop.f32.mrf.mxu0
        %v813 = vadd.f32 0.0, %v812
        %v814 = vpop.f32.mrf.mxu0
        %v815 = vpop.f32.mrf.mxu0
        %v816 = vadd.f32 0.0, %v815
        %v817 = vpop.f32.mrf.mxu0
        %818 = vmatprep.mubr.bf16.mxu0 0
        %819 = vmatmul.mubr.bf16.gmra.mxu0 %v749
        %v820 = vpop.f32.mrf.mxu0
        %v821 = vadd.f32 0.0, %v820
        %v822 = vpop.f32.mrf.mxu0
        %v823 = vpop.f32.mrf.mxu0
        %v824 = vadd.f32 0.0, %v823
        %v825 = vpop.f32.mrf.mxu0
        %826 = vmatprep.mubr.bf16.mxu0 0
        %827 = vmatmul.mubr.bf16.gmra.mxu0 %v752
        %v828 = vpop.f32.mrf.mxu0
        %v829 = vadd.f32 0.0, %v828
        %v830 = vpop.f32.mrf.mxu0
        %v831 = vpop.f32.mrf.mxu0
        %v832 = vadd.f32 0.0, %v831
        %v833 = vpop.f32.mrf.mxu0
        %834 = vmatprep.mubr.bf16.mxu0 0
        %835 = vmatmul.mubr.bf16.gmra.mxu0 %v755
        %v836 = vpop.f32.mrf.mxu0
        %v837 = vadd.f32 0.0, %v836
        %v838 = vpop.f32.mrf.mxu0
        %v839 = vpop.f32.mrf.mxu0
        %v840 = vadd.f32 0.0, %v839
        %v841 = vpop.f32.mrf.mxu0
        %842 = vmatprep.mubr.bf16.mxu0 0
        %843 = vmatmul.mubr.bf16.gmra.mxu0 %v758
        %v844 = vpop.f32.mrf.mxu0
        %v845 = vadd.f32 0.0, %v844
        %v846 = vpop.f32.mrf.mxu0
        %v847 = vpop.f32.mrf.mxu0
        %v848 = vadd.f32 0.0, %v847
        %v849 = vpop.f32.mrf.mxu0
        %850 = vmatprep.mubr.bf16.mxu0 0
        %851 = vmatmul.mubr.bf16.gmra.mxu0 %v761
        %v852 = vpop.f32.mrf.mxu0
        %v853 = vadd.f32 0.0, %v852
        %v854 = vpop.f32.mrf.mxu0
        %v855 = vpop.f32.mrf.mxu0
        %v856 = vadd.f32 0.0, %v855
        %v857 = vpop.f32.mrf.mxu0
        %858 = vmatprep.mubr.bf16.mxu0 0
        %859 = vmatmul.mubr.bf16.gmra.mxu0 %v764
        %v860 = vpop.f32.mrf.mxu0
        %v861 = vadd.f32 0.0, %v860
        %v862 = vpop.f32.mrf.mxu0
        %v863 = vpop.f32.mrf.mxu0
        %v864 = vadd.f32 0.0, %v863
        %v865 = vpop.f32.mrf.mxu0
        %866 = vdwg.mxu0
        %v867 = vsel %vm722, 1, 0
        %v868 = vlaneseq
        %v869 = vshrl.u32 %v868, 7
        %v870 = vsub.s32 0, %v869
        %v871 = vrot.slane %v867, %v870
        %vm872 = vcmp.eq.s32.totalorder %v871, 1
        %v873 = vsel %vm872, -1e+30, %v805
        %v874 = vsel %vm872, -1e+30, %v808
        %v875 = vsel %vm872, -1e+30, %v813
        %v876 = vsel %vm872, -1e+30, %v816
        %v877 = vsel %vm872, -1e+30, %v821
        %v878 = vsel %vm872, -1e+30, %v824
        %v879 = vsel %vm872, -1e+30, %v829
        %v880 = vsel %vm872, -1e+30, %v832
        %v881 = vsel %vm872, -1e+30, %v837
        %v882 = vsel %vm872, -1e+30, %v840
        %v883 = vsel %vm872, -1e+30, %v845
        %v884 = vsel %vm872, -1e+30, %v848
        %v885 = vsel %vm872, -1e+30, %v853
        %v886 = vsel %vm872, -1e+30, %v856
        %v887 = vsel %vm872, -1e+30, %v861
        %v888 = vsel %vm872, -1e+30, %v864
        %889 = vmax.xlane.f32.xlu0 %v873
        %v890 = vpop.xlane.xlu0 %889
        %891 = vmax.xlane.f32.xlu0 %v874
        %v892 = vpop.xlane.xlu0 %891
        %893 = vmax.xlane.f32.xlu0 %v875
        %v894 = vpop.xlane.xlu0 %893
        %895 = vmax.xlane.f32.xlu0 %v876
        %v896 = vpop.xlane.xlu0 %895
        %897 = vmax.xlane.f32.xlu0 %v877
        %v898 = vpop.xlane.xlu0 %897
        %899 = vmax.xlane.f32.xlu0 %v878
        %v900 = vpop.xlane.xlu0 %899
        %901 = vmax.xlane.f32.xlu0 %v879
        %v902 = vpop.xlane.xlu0 %901
        %903 = vmax.xlane.f32.xlu0 %v880
        %v904 = vpop.xlane.xlu0 %903
        %905 = vmax.xlane.f32.xlu0 %v881
        %v906 = vpop.xlane.xlu0 %905
        %907 = vmax.xlane.f32.xlu0 %v882
        %v908 = vpop.xlane.xlu0 %907
        %909 = vmax.xlane.f32.xlu0 %v883
        %v910 = vpop.xlane.xlu0 %909
        %911 = vmax.xlane.f32.xlu0 %v884
        %v912 = vpop.xlane.xlu0 %911
        %913 = vmax.xlane.f32.xlu0 %v885
        %v914 = vpop.xlane.xlu0 %913
        %915 = vmax.xlane.f32.xlu0 %v886
        %v916 = vpop.xlane.xlu0 %915
        %917 = vmax.xlane.f32.xlu0 %v887
        %v918 = vpop.xlane.xlu0 %917
        %919 = vmax.xlane.f32.xlu0 %v888
        %v920 = vpop.xlane.xlu0 %919
        %v921 = vsub.f32 %v873, %v890
        %v922 = vsub.f32 %v874, %v892
        %v923 = vsub.f32 %v875, %v894
        %v924 = vsub.f32 %v876, %v896
        %v925 = vsub.f32 %v877, %v898
        %v926 = vsub.f32 %v878, %v900
        %v927 = vsub.f32 %v879, %v902
        %v928 = vsub.f32 %v880, %v904
        %v929 = vsub.f32 %v881, %v906
        %v930 = vsub.f32 %v882, %v908
        %v931 = vsub.f32 %v883, %v910
        %v932 = vsub.f32 %v884, %v912
        %v933 = vsub.f32 %v885, %v914
        %v934 = vsub.f32 %v886, %v916
        %v935 = vsub.f32 %v887, %v918
        %v936 = vsub.f32 %v888, %v920
        %v937 = vmul.f32 %v921, 1.442695
        %v938 = vpow.pop %v937
        %v939 = vmul.f32 %v922, 1.442695
        %v940 = vpow.pop %v939
        %v941 = vmul.f32 %v923, 1.442695
        %v942 = vpow.pop %v941
        %v943 = vmul.f32 %v924, 1.442695
        %v944 = vpow.pop %v943
        %v945 = vmul.f32 %v925, 1.442695
        %v946 = vpow.pop %v945
        %v947 = vmul.f32 %v926, 1.442695
        %v948 = vpow.pop %v947
        %v949 = vmul.f32 %v927, 1.442695
        %v950 = vpow.pop %v949
        %v951 = vmul.f32 %v928, 1.442695
        %v952 = vpow.pop %v951
        %v953 = vmul.f32 %v929, 1.442695
        %v954 = vpow.pop %v953
        %v955 = vmul.f32 %v930, 1.442695
        %v956 = vpow.pop %v955
        %v957 = vmul.f32 %v931, 1.442695
        %v958 = vpow.pop %v957
        %v959 = vmul.f32 %v932, 1.442695
        %v960 = vpow.pop %v959
        %v961 = vmul.f32 %v933, 1.442695
        %v962 = vpow.pop %v961
        %v963 = vmul.f32 %v934, 1.442695
        %v964 = vpow.pop %v963
        %v965 = vmul.f32 %v935, 1.442695
        %v966 = vpow.pop %v965
        %v967 = vmul.f32 %v936, 1.442695
        %v968 = vpow.pop %v967
        %969 = vadd.xlane.f32.xlu0 %v938
        %v970 = vpop.xlane.xlu0 %969
        %971 = vadd.xlane.f32.xlu0 %v940
        %v972 = vpop.xlane.xlu0 %971
        %973 = vadd.xlane.f32.xlu0 %v942
        %v974 = vpop.xlane.xlu0 %973
        %975 = vadd.xlane.f32.xlu0 %v944
        %v976 = vpop.xlane.xlu0 %975
        %977 = vadd.xlane.f32.xlu0 %v946
        %v978 = vpop.xlane.xlu0 %977
        %979 = vadd.xlane.f32.xlu0 %v948
        %v980 = vpop.xlane.xlu0 %979
        %981 = vadd.xlane.f32.xlu0 %v950
        %v982 = vpop.xlane.xlu0 %981
        %983 = vadd.xlane.f32.xlu0 %v952
        %v984 = vpop.xlane.xlu0 %983
        %985 = vadd.xlane.f32.xlu0 %v954
        %v986 = vpop.xlane.xlu0 %985
        %987 = vadd.xlane.f32.xlu0 %v956
        %v988 = vpop.xlane.xlu0 %987
        %989 = vadd.xlane.f32.xlu0 %v958
        %v990 = vpop.xlane.xlu0 %989
        %991 = vadd.xlane.f32.xlu0 %v960
        %v992 = vpop.xlane.xlu0 %991
        %993 = vadd.xlane.f32.xlu0 %v962
        %v994 = vpop.xlane.xlu0 %993
        %995 = vadd.xlane.f32.xlu0 %v964
        %v996 = vpop.xlane.xlu0 %995
        %997 = vadd.xlane.f32.xlu0 %v966
        %v998 = vpop.xlane.xlu0 %997
        %999 = vadd.xlane.f32.xlu0 %v968
        %v1000 = vpop.xlane.xlu0 %999
        %v1001 = vrcp.pop %v970
        %v1002 = vrcp.pop %v972
        %v1003 = vrcp.pop %v974
        %v1004 = vrcp.pop %v976
        %v1005 = vrcp.pop %v978
        %v1006 = vrcp.pop %v980
        %v1007 = vrcp.pop %v982
        %v1008 = vrcp.pop %v984
        %v1009 = vrcp.pop %v986
        %v1010 = vrcp.pop %v988
        %v1011 = vrcp.pop %v990
        %v1012 = vrcp.pop %v992
        %v1013 = vrcp.pop %v994
        %v1014 = vrcp.pop %v996
        %v1015 = vrcp.pop %v998
        %v1016 = vrcp.pop %v1000
        %v1017 = vmul.f32 %v938, %v1001
        %v1018 = vmul.f32 %v940, %v1002
        %v1019 = vmul.f32 %v942, %v1003
        %v1020 = vmul.f32 %v944, %v1004
        %v1021 = vmul.f32 %v946, %v1005
        %v1022 = vmul.f32 %v948, %v1006
        %v1023 = vmul.f32 %v950, %v1007
        %v1024 = vmul.f32 %v952, %v1008
        %v1025 = vmul.f32 %v954, %v1009
        %v1026 = vmul.f32 %v956, %v1010
        %v1027 = vmul.f32 %v958, %v1011
        %v1028 = vmul.f32 %v960, %v1012
        %v1029 = vmul.f32 %v962, %v1013
        %v1030 = vmul.f32 %v964, %v1014
        %v1031 = vmul.f32 %v966, %v1015
        %v1032 = vmul.f32 %v968, %v1016
        %v1033 = vpack.c.bf16 %v1018, %v1017
        %v1034 = vpack.c.bf16 %v1020, %v1019
        %v1035 = vpack.c.bf16 %v1022, %v1021
        %v1036 = vpack.c.bf16 %v1024, %v1023
        %v1037 = vpack.c.bf16 %v1026, %v1025
        %v1038 = vpack.c.bf16 %v1028, %v1027
        %v1039 = vpack.c.bf16 %v1030, %v1029
        %v1040 = vpack.c.bf16 %v1032, %v1031
        %1041 = vmatprep.subr.bf16.mxu0 0
        %1042 = vmatpush1.bf16.xpose.msra.mxu0 %v1040
        %1043 = vmatprep.subr.bf16.mxu0 0
        %1044 = vmatpush1.bf16.xpose.msra.mxu0 %v1039
        %1045 = vmatprep.subr.bf16.mxu0 0
        %1046 = vmatpush1.bf16.xpose.msra.mxu0 %v1038
        %1047 = vmatprep.subr.bf16.mxu0 0
        %1048 = vmatpush1.bf16.xpose.msra.mxu0 %v1037
        %1049 = vmatprep.subr.bf16.mxu0 0
        %1050 = vmatpush1.bf16.xpose.msra.mxu0 %v1036
        %1051 = vmatprep.subr.bf16.mxu0 0
        %1052 = vmatpush1.bf16.xpose.msra.mxu0 %v1035
        %1053 = vmatprep.subr.bf16.mxu0 0
        %1054 = vmatpush1.bf16.xpose.msra.mxu0 %v1034
        %1055 = vmatprep.subr.bf16.mxu0 0
        %1056 = vmatpush1.bf16.xpose.msra.mxu0 %v1033
        %1057 = vmatprep.subr.bf16.mxu0 0
        %1058 = vmatpush2.bf16.xpose.msra.mxu0 0
        %1059 = vmatprep.subr.bf16.mxu0 0
        %1060 = vmatpush2.bf16.xpose.msra.mxu0 0
        %1061 = vmatprep.subr.bf16.mxu0 0
        %1062 = vmatpush2.bf16.xpose.msra.mxu0 0
        %1063 = vmatprep.subr.bf16.mxu0 0
        %1064 = vmatpush2.bf16.xpose.msra.mxu0 0
        %1065 = vmatprep.subr.bf16.mxu0 0
        %1066 = vmatpush2.bf16.xpose.msra.mxu0 0
        %1067 = vmatprep.subr.bf16.mxu0 0
        %1068 = vmatpush2.bf16.xpose.msra.mxu0 0
        %1069 = vmatprep.subr.bf16.mxu0 0
        %1070 = vmatpush2.bf16.xpose.msra.mxu0 0
        %1071 = vmatprep.subr.bf16.mxu0 0
        %1072 = vmatpush2.bf16.xpose.msra.mxu0 0
        %1073 = vmatprep.mubr.bf16.mxu0 0
        %1074 = vmatmul.mubr.bf16.gmra.mxu0 %v724
        %v1075 = vpop.f32.mrf.mxu0
        %v1076 = vadd.f32 0.0, %v1075
        %v1077 = vpop.f32.mrf.mxu0
        %v1078 = vpop.f32.mrf.mxu0
        %v1079 = vpop.f32.mrf.mxu0
        %1080 = vdwg.mxu0
        %1081 = vst [vmem:[#allocation4] sm:$0xff] %v1076
        %v1082 = vld [vmem:[#allocation2 + $0x4] sm:$0xf]
        %v1083 = vld [vmem:[#allocation3 + $0x4] sm:$0xf]
        %v1085 = vrot.slane %v719, 4
        %1087 = vxpose.xlu0.c.b16.start [1/8] %v1085, 128
        %1088 = vxpose.xlu0.c.b16.cont [2/8] 0, 128
        %1089 = vxpose.xlu0.c.b16.cont [3/8] 0, 128
        %1090 = vxpose.xlu0.c.b16.cont [4/8] 0, 128
        %1091 = vxpose.xlu0.c.b16.cont [5/8] 0, 128
        %1092 = vxpose.xlu0.c.b16.cont [6/8] 0, 128
        %1093 = vxpose.xlu0.c.b16.cont [7/8] 0, 128
        %1094 = vxpose.xlu0.c.b16.end [8/8] 0, 128
        %v1095 = vpop.trf.xlu0
        %v1096 = vpop.trf.xlu0
        %v1097 = vpop.trf.xlu0
        %v1098 = vpop.trf.xlu0
        %v1099 = vpop.trf.xlu0
        %v1100 = vpop.trf.xlu0
        %v1101 = vpop.trf.xlu0
        %v1102 = vpop.trf.xlu0
        %v1104 = vsel %vm741, %v1095, 0
        %v1107 = vsel %vm741, %v1096, 0
        %v1110 = vsel %vm741, %v1097, 0
        %v1113 = vsel %vm741, %v1098, 0
        %v1116 = vsel %vm741, %v1099, 0
        %v1119 = vsel %vm741, %v1100, 0
        %v1122 = vsel %vm741, %v1101, 0
        %v1125 = vsel %vm741, %v1102, 0
        %v1128 = vsel %vm766, %v1082, 0
        %1130 = vmatprep.subr.bf16.mxu0 0
        %1131 = vmatpush1.bf16.msra.mxu0 0
        %1132 = vmatprep.subr.bf16.mxu0 0
        %1133 = vmatpush1.bf16.msra.mxu0 0
        %1134 = vmatprep.subr.bf16.mxu0 0
        %1135 = vmatpush1.bf16.msra.mxu0 0
        %1136 = vmatprep.subr.bf16.mxu0 0
        %1137 = vmatpush1.bf16.msra.mxu0 0
        %1138 = vmatprep.subr.bf16.mxu0 0
        %1139 = vmatpush1.bf16.msra.mxu0 0
        %1140 = vmatprep.subr.bf16.mxu0 0
        %1141 = vmatpush1.bf16.msra.mxu0 0
        %1142 = vmatprep.subr.bf16.mxu0 0
        %1143 = vmatpush1.bf16.msra.mxu0 0
        %1144 = vmatprep.subr.bf16.mxu0 0
        %1145 = vmatpush1.bf16.msra.mxu0 %v1128
        %1146 = vmatprep.subr.bf16.mxu0 0
        %1147 = vmatpush2.bf16.msra.mxu0 0
        %1148 = vmatprep.subr.bf16.mxu0 0
        %1149 = vmatpush2.bf16.msra.mxu0 0
        %1150 = vmatprep.subr.bf16.mxu0 0
        %1151 = vmatpush2.bf16.msra.mxu0 0
        %1152 = vmatprep.subr.bf16.mxu0 0
        %1153 = vmatpush2.bf16.msra.mxu0 0
        %1154 = vmatprep.subr.bf16.mxu0 0
        %1155 = vmatpush2.bf16.msra.mxu0 0
        %1156 = vmatprep.subr.bf16.mxu0 0
        %1157 = vmatpush2.bf16.msra.mxu0 0
        %1158 = vmatprep.subr.bf16.mxu0 0
        %1159 = vmatpush2.bf16.msra.mxu0 0
        %1160 = vmatprep.subr.bf16.mxu0 0
        %1161 = vmatpush2.bf16.msra.mxu0 0
        %1162 = vmatprep.mubr.bf16.mxu0 0
        %1163 = vmatmul.mubr.bf16.gmra.mxu0 %v1104
        %v1164 = vpop.f32.mrf.mxu0
        %v1165 = vadd.f32 0.0, %v1164
        %v1166 = vpop.f32.mrf.mxu0
        %v1167 = vpop.f32.mrf.mxu0
        %v1168 = vadd.f32 0.0, %v1167
        %v1169 = vpop.f32.mrf.mxu0
        %1170 = vmatprep.mubr.bf16.mxu0 0
        %1171 = vmatmul.mubr.bf16.gmra.mxu0 %v1107
        %v1172 = vpop.f32.mrf.mxu0
        %v1173 = vadd.f32 0.0, %v1172
        %v1174 = vpop.f32.mrf.mxu0
        %v1175 = vpop.f32.mrf.mxu0
        %v1176 = vadd.f32 0.0, %v1175
        %v1177 = vpop.f32.mrf.mxu0
        %1178 = vmatprep.mubr.bf16.mxu0 0
        %1179 = vmatmul.mubr.bf16.gmra.mxu0 %v1110
        %v1180 = vpop.f32.mrf.mxu0
        %v1181 = vadd.f32 0.0, %v1180
        %v1182 = vpop.f32.mrf.mxu0
        %v1183 = vpop.f32.mrf.mxu0
        %v1184 = vadd.f32 0.0, %v1183
        %v1185 = vpop.f32.mrf.mxu0
        %1186 = vmatprep.mubr.bf16.mxu0 0
        %1187 = vmatmul.mubr.bf16.gmra.mxu0 %v1113
        %v1188 = vpop.f32.mrf.mxu0
        %v1189 = vadd.f32 0.0, %v1188
        %v1190 = vpop.f32.mrf.mxu0
        %v1191 = vpop.f32.mrf.mxu0
        %v1192 = vadd.f32 0.0, %v1191
        %v1193 = vpop.f32.mrf.mxu0
        %1194 = vmatprep.mubr.bf16.mxu0 0
        %1195 = vmatmul.mubr.bf16.gmra.mxu0 %v1116
        %v1196 = vpop.f32.mrf.mxu0
        %v1197 = vadd.f32 0.0, %v1196
        %v1198 = vpop.f32.mrf.mxu0
        %v1199 = vpop.f32.mrf.mxu0
        %v1200 = vadd.f32 0.0, %v1199
        %v1201 = vpop.f32.mrf.mxu0
        %1202 = vmatprep.mubr.bf16.mxu0 0
        %1203 = vmatmul.mubr.bf16.gmra.mxu0 %v1119
        %v1204 = vpop.f32.mrf.mxu0
        %v1205 = vadd.f32 0.0, %v1204
        %v1206 = vpop.f32.mrf.mxu0
        %v1207 = vpop.f32.mrf.mxu0
        %v1208 = vadd.f32 0.0, %v1207
        %v1209 = vpop.f32.mrf.mxu0
        %1210 = vmatprep.mubr.bf16.mxu0 0
        %1211 = vmatmul.mubr.bf16.gmra.mxu0 %v1122
        %v1212 = vpop.f32.mrf.mxu0
        %v1213 = vadd.f32 0.0, %v1212
        %v1214 = vpop.f32.mrf.mxu0
        %v1215 = vpop.f32.mrf.mxu0
        %v1216 = vadd.f32 0.0, %v1215
        %v1217 = vpop.f32.mrf.mxu0
        %1218 = vmatprep.mubr.bf16.mxu0 0
        %1219 = vmatmul.mubr.bf16.gmra.mxu0 %v1125
        %v1220 = vpop.f32.mrf.mxu0
        %v1221 = vadd.f32 0.0, %v1220
        %v1222 = vpop.f32.mrf.mxu0
        %v1223 = vpop.f32.mrf.mxu0
        %v1224 = vadd.f32 0.0, %v1223
        %v1225 = vpop.f32.mrf.mxu0
        %1226 = vdwg.mxu0
        %v1227 = vsel %vm872, -1e+30, %v1165
        %v1228 = vsel %vm872, -1e+30, %v1168
        %v1229 = vsel %vm872, -1e+30, %v1173
        %v1230 = vsel %vm872, -1e+30, %v1176
        %v1231 = vsel %vm872, -1e+30, %v1181
        %v1232 = vsel %vm872, -1e+30, %v1184
        %v1233 = vsel %vm872, -1e+30, %v1189
        %v1234 = vsel %vm872, -1e+30, %v1192
        %v1235 = vsel %vm872, -1e+30, %v1197
        %v1236 = vsel %vm872, -1e+30, %v1200
        %v1237 = vsel %vm872, -1e+30, %v1205
        %v1238 = vsel %vm872, -1e+30, %v1208
        %v1239 = vsel %vm872, -1e+30, %v1213
        %v1240 = vsel %vm872, -1e+30, %v1216
        %v1241 = vsel %vm872, -1e+30, %v1221
        %v1242 = vsel %vm872, -1e+30, %v1224
        %1243 = vmax.xlane.f32.xlu0 %v1227
        %v1244 = vpop.xlane.xlu0 %1243
        %1245 = vmax.xlane.f32.xlu0 %v1228
        %v1246 = vpop.xlane.xlu0 %1245
        %1247 = vmax.xlane.f32.xlu0 %v1229
        %v1248 = vpop.xlane.xlu0 %1247
        %1249 = vmax.xlane.f32.xlu0 %v1230
        %v1250 = vpop.xlane.xlu0 %1249
        %1251 = vmax.xlane.f32.xlu0 %v1231
        %v1252 = vpop.xlane.xlu0 %1251
        %1253 = vmax.xlane.f32.xlu0 %v1232
        %v1254 = vpop.xlane.xlu0 %1253
        %1255 = vmax.xlane.f32.xlu0 %v1233
        %v1256 = vpop.xlane.xlu0 %1255
        %1257 = vmax.xlane.f32.xlu0 %v1234
        %v1258 = vpop.xlane.xlu0 %1257
        %1259 = vmax.xlane.f32.xlu0 %v1235
        %v1260 = vpop.xlane.xlu0 %1259
        %1261 = vmax.xlane.f32.xlu0 %v1236
        %v1262 = vpop.xlane.xlu0 %1261
        %1263 = vmax.xlane.f32.xlu0 %v1237
        %v1264 = vpop.xlane.xlu0 %1263
        %1265 = vmax.xlane.f32.xlu0 %v1238
        %v1266 = vpop.xlane.xlu0 %1265
        %1267 = vmax.xlane.f32.xlu0 %v1239
        %v1268 = vpop.xlane.xlu0 %1267
        %1269 = vmax.xlane.f32.xlu0 %v1240
        %v1270 = vpop.xlane.xlu0 %1269
        %1271 = vmax.xlane.f32.xlu0 %v1241
        %v1272 = vpop.xlane.xlu0 %1271
        %1273 = vmax.xlane.f32.xlu0 %v1242
        %v1274 = vpop.xlane.xlu0 %1273
        %v1275 = vsub.f32 %v1227, %v1244
        %v1276 = vsub.f32 %v1228, %v1246
        %v1277 = vsub.f32 %v1229, %v1248
        %v1278 = vsub.f32 %v1230, %v1250
        %v1279 = vsub.f32 %v1231, %v1252
        %v1280 = vsub.f32 %v1232, %v1254
        %v1281 = vsub.f32 %v1233, %v1256
        %v1282 = vsub.f32 %v1234, %v1258
        %v1283 = vsub.f32 %v1235, %v1260
        %v1284 = vsub.f32 %v1236, %v1262
        %v1285 = vsub.f32 %v1237, %v1264
        %v1286 = vsub.f32 %v1238, %v1266
        %v1287 = vsub.f32 %v1239, %v1268
        %v1288 = vsub.f32 %v1240, %v1270
        %v1289 = vsub.f32 %v1241, %v1272
        %v1290 = vsub.f32 %v1242, %v1274
        %v1291 = vmul.f32 %v1275, 1.442695
        %v1292 = vpow.pop %v1291
        %v1293 = vmul.f32 %v1276, 1.442695
        %v1294 = vpow.pop %v1293
        %v1295 = vmul.f32 %v1277, 1.442695
        %v1296 = vpow.pop %v1295
        %v1297 = vmul.f32 %v1278, 1.442695
        %v1298 = vpow.pop %v1297
        %v1299 = vmul.f32 %v1279, 1.442695
        %v1300 = vpow.pop %v1299
        %v1301 = vmul.f32 %v1280, 1.442695
        %v1302 = vpow.pop %v1301
        %v1303 = vmul.f32 %v1281, 1.442695
        %v1304 = vpow.pop %v1303
        %v1305 = vmul.f32 %v1282, 1.442695
        %v1306 = vpow.pop %v1305
        %v1307 = vmul.f32 %v1283, 1.442695
        %v1308 = vpow.pop %v1307
        %v1309 = vmul.f32 %v1284, 1.442695
        %v1310 = vpow.pop %v1309
        %v1311 = vmul.f32 %v1285, 1.442695
        %v1312 = vpow.pop %v1311
        %v1313 = vmul.f32 %v1286, 1.442695
        %v1314 = vpow.pop %v1313
        %v1315 = vmul.f32 %v1287, 1.442695
        %v1316 = vpow.pop %v1315
        %v1317 = vmul.f32 %v1288, 1.442695
        %v1318 = vpow.pop %v1317
        %v1319 = vmul.f32 %v1289, 1.442695
        %v1320 = vpow.pop %v1319
        %v1321 = vmul.f32 %v1290, 1.442695
        %v1322 = vpow.pop %v1321
        %1323 = vadd.xlane.f32.xlu0 %v1292
        %v1324 = vpop.xlane.xlu0 %1323
        %1325 = vadd.xlane.f32.xlu0 %v1294
        %v1326 = vpop.xlane.xlu0 %1325
        %1327 = vadd.xlane.f32.xlu0 %v1296
        %v1328 = vpop.xlane.xlu0 %1327
        %1329 = vadd.xlane.f32.xlu0 %v1298
        %v1330 = vpop.xlane.xlu0 %1329
        %1331 = vadd.xlane.f32.xlu0 %v1300
        %v1332 = vpop.xlane.xlu0 %1331
        %1333 = vadd.xlane.f32.xlu0 %v1302
        %v1334 = vpop.xlane.xlu0 %1333
        %1335 = vadd.xlane.f32.xlu0 %v1304
        %v1336 = vpop.xlane.xlu0 %1335
        %1337 = vadd.xlane.f32.xlu0 %v1306
        %v1338 = vpop.xlane.xlu0 %1337
        %1339 = vadd.xlane.f32.xlu0 %v1308
        %v1340 = vpop.xlane.xlu0 %1339
        %1341 = vadd.xlane.f32.xlu0 %v1310
        %v1342 = vpop.xlane.xlu0 %1341
        %1343 = vadd.xlane.f32.xlu0 %v1312
        %v1344 = vpop.xlane.xlu0 %1343
        %1345 = vadd.xlane.f32.xlu0 %v1314
        %v1346 = vpop.xlane.xlu0 %1345
        %1347 = vadd.xlane.f32.xlu0 %v1316
        %v1348 = vpop.xlane.xlu0 %1347
        %1349 = vadd.xlane.f32.xlu0 %v1318
        %v1350 = vpop.xlane.xlu0 %1349
        %1351 = vadd.xlane.f32.xlu0 %v1320
        %v1352 = vpop.xlane.xlu0 %1351
        %1353 = vadd.xlane.f32.xlu0 %v1322
        %v1354 = vpop.xlane.xlu0 %1353
        %v1355 = vrcp.pop %v1324
        %v1356 = vrcp.pop %v1326
        %v1357 = vrcp.pop %v1328
        %v1358 = vrcp.pop %v1330
        %v1359 = vrcp.pop %v1332
        %v1360 = vrcp.pop %v1334
        %v1361 = vrcp.pop %v1336
        %v1362 = vrcp.pop %v1338
        %v1363 = vrcp.pop %v1340
        %v1364 = vrcp.pop %v1342
        %v1365 = vrcp.pop %v1344
        %v1366 = vrcp.pop %v1346
        %v1367 = vrcp.pop %v1348
        %v1368 = vrcp.pop %v1350
        %v1369 = vrcp.pop %v1352
        %v1370 = vrcp.pop %v1354
        %v1371 = vmul.f32 %v1292, %v1355
        %v1372 = vmul.f32 %v1294, %v1356
        %v1373 = vmul.f32 %v1296, %v1357
        %v1374 = vmul.f32 %v1298, %v1358
        %v1375 = vmul.f32 %v1300, %v1359
        %v1376 = vmul.f32 %v1302, %v1360
        %v1377 = vmul.f32 %v1304, %v1361
        %v1378 = vmul.f32 %v1306, %v1362
        %v1379 = vmul.f32 %v1308, %v1363
        %v1380 = vmul.f32 %v1310, %v1364
        %v1381 = vmul.f32 %v1312, %v1365
        %v1382 = vmul.f32 %v1314, %v1366
        %v1383 = vmul.f32 %v1316, %v1367
        %v1384 = vmul.f32 %v1318, %v1368
        %v1385 = vmul.f32 %v1320, %v1369
        %v1386 = vmul.f32 %v1322, %v1370
        %v1387 = vpack.c.bf16 %v1372, %v1371
        %v1388 = vpack.c.bf16 %v1374, %v1373
        %v1389 = vpack.c.bf16 %v1376, %v1375
        %v1390 = vpack.c.bf16 %v1378, %v1377
        %v1391 = vpack.c.bf16 %v1380, %v1379
        %v1392 = vpack.c.bf16 %v1382, %v1381
        %v1393 = vpack.c.bf16 %v1384, %v1383
        %v1394 = vpack.c.bf16 %v1386, %v1385
        %1395 = vmatprep.subr.bf16.mxu0 0
        %1396 = vmatpush1.bf16.xpose.msra.mxu0 %v1394
        %1397 = vmatprep.subr.bf16.mxu0 0
        %1398 = vmatpush1.bf16.xpose.msra.mxu0 %v1393
        %1399 = vmatprep.subr.bf16.mxu0 0
        %1400 = vmatpush1.bf16.xpose.msra.mxu0 %v1392
        %1401 = vmatprep.subr.bf16.mxu0 0
        %1402 = vmatpush1.bf16.xpose.msra.mxu0 %v1391
        %1403 = vmatprep.subr.bf16.mxu0 0
        %1404 = vmatpush1.bf16.xpose.msra.mxu0 %v1390
        %1405 = vmatprep.subr.bf16.mxu0 0
        %1406 = vmatpush1.bf16.xpose.msra.mxu0 %v1389
        %1407 = vmatprep.subr.bf16.mxu0 0
        %1408 = vmatpush1.bf16.xpose.msra.mxu0 %v1388
        %1409 = vmatprep.subr.bf16.mxu0 0
        %1410 = vmatpush1.bf16.xpose.msra.mxu0 %v1387
        %1411 = vmatprep.subr.bf16.mxu0 0
        %1412 = vmatpush2.bf16.xpose.msra.mxu0 0
        %1413 = vmatprep.subr.bf16.mxu0 0
        %1414 = vmatpush2.bf16.xpose.msra.mxu0 0
        %1415 = vmatprep.subr.bf16.mxu0 0
        %1416 = vmatpush2.bf16.xpose.msra.mxu0 0
        %1417 = vmatprep.subr.bf16.mxu0 0
        %1418 = vmatpush2.bf16.xpose.msra.mxu0 0
        %1419 = vmatprep.subr.bf16.mxu0 0
        %1420 = vmatpush2.bf16.xpose.msra.mxu0 0
        %1421 = vmatprep.subr.bf16.mxu0 0
        %1422 = vmatpush2.bf16.xpose.msra.mxu0 0
        %1423 = vmatprep.subr.bf16.mxu0 0
        %1424 = vmatpush2.bf16.xpose.msra.mxu0 0
        %1425 = vmatprep.subr.bf16.mxu0 0
        %1426 = vmatpush2.bf16.xpose.msra.mxu0 0
        %1427 = vmatprep.mubr.bf16.mxu0 0
        %1428 = vmatmul.mubr.bf16.gmra.mxu0 %v1083
        %v1429 = vpop.f32.mrf.mxu0
        %v1430 = vadd.f32 0.0, %v1429
        %v1431 = vpop.f32.mrf.mxu0
        %v1432 = vpop.f32.mrf.mxu0
        %v1433 = vpop.f32.mrf.mxu0
        %1434 = vdwg.mxu0
        %1435 = vst [vmem:[#allocation4 + $0x8] sm:$0xff] %v1430
        %v1436 = vld [vmem:[#allocation2 + $0x8] sm:$0xf]
        %v1437 = vld [vmem:[#allocation3 + $0x8] sm:$0xf]
        %1438 = vxpose.xlu0.c.b16.start [1/8] %v720, 128
        %1439 = vxpose.xlu0.c.b16.cont [2/8] 0, 128
        %1440 = vxpose.xlu0.c.b16.cont [3/8] 0, 128
        %1441 = vxpose.xlu0.c.b16.cont [4/8] 0, 128
        %1442 = vxpose.xlu0.c.b16.cont [5/8] 0, 128
        %1443 = vxpose.xlu0.c.b16.cont [6/8] 0, 128
        %1444 = vxpose.xlu0.c.b16.cont [7/8] 0, 128
        %1445 = vxpose.xlu0.c.b16.end [8/8] 0, 128
        %v1446 = vpop.trf.xlu0
        %v1447 = vpop.trf.xlu0
        %v1448 = vpop.trf.xlu0
        %v1449 = vpop.trf.xlu0
        %v1450 = vpop.trf.xlu0
        %v1451 = vpop.trf.xlu0
        %v1452 = vpop.trf.xlu0
        %v1453 = vpop.trf.xlu0
        %v1455 = vsel %vm741, %v1446, 0
        %v1458 = vsel %vm741, %v1447, 0
        %v1461 = vsel %vm741, %v1448, 0
        %v1464 = vsel %vm741, %v1449, 0
        %v1467 = vsel %vm741, %v1450, 0
        %v1470 = vsel %vm741, %v1451, 0
        %v1473 = vsel %vm741, %v1452, 0
        %v1476 = vsel %vm741, %v1453, 0
        %v1479 = vsel %vm766, %v1436, 0
        %1481 = vmatprep.subr.bf16.mxu0 0
        %1482 = vmatpush1.bf16.msra.mxu0 0
        %1483 = vmatprep.subr.bf16.mxu0 0
        %1484 = vmatpush1.bf16.msra.mxu0 0
        %1485 = vmatprep.subr.bf16.mxu0 0
        %1486 = vmatpush1.bf16.msra.mxu0 0
        %1487 = vmatprep.subr.bf16.mxu0 0
        %1488 = vmatpush1.bf16.msra.mxu0 0
        %1489 = vmatprep.subr.bf16.mxu0 0
        %1490 = vmatpush1.bf16.msra.mxu0 0
        %1491 = vmatprep.subr.bf16.mxu0 0
        %1492 = vmatpush1.bf16.msra.mxu0 0
        %1493 = vmatprep.subr.bf16.mxu0 0
        %1494 = vmatpush1.bf16.msra.mxu0 0
        %1495 = vmatprep.subr.bf16.mxu0 0
        %1496 = vmatpush1.bf16.msra.mxu0 %v1479
        %1497 = vmatprep.subr.bf16.mxu0 0
        %1498 = vmatpush2.bf16.msra.mxu0 0
        %1499 = vmatprep.subr.bf16.mxu0 0
        %1500 = vmatpush2.bf16.msra.mxu0 0
        %1501 = vmatprep.subr.bf16.mxu0 0
        %1502 = vmatpush2.bf16.msra.mxu0 0
        %1503 = vmatprep.subr.bf16.mxu0 0
        %1504 = vmatpush2.bf16.msra.mxu0 0
        %1505 = vmatprep.subr.bf16.mxu0 0
        %1506 = vmatpush2.bf16.msra.mxu0 0
        %1507 = vmatprep.subr.bf16.mxu0 0
        %1508 = vmatpush2.bf16.msra.mxu0 0
        %1509 = vmatprep.subr.bf16.mxu0 0
        %1510 = vmatpush2.bf16.msra.mxu0 0
        %1511 = vmatprep.subr.bf16.mxu0 0
        %1512 = vmatpush2.bf16.msra.mxu0 0
        %1513 = vmatprep.mubr.bf16.mxu0 0
        %1514 = vmatmul.mubr.bf16.gmra.mxu0 %v1455
        %v1515 = vpop.f32.mrf.mxu0
        %v1516 = vadd.f32 0.0, %v1515
        %v1517 = vpop.f32.mrf.mxu0
        %v1518 = vpop.f32.mrf.mxu0
        %v1519 = vadd.f32 0.0, %v1518
        %v1520 = vpop.f32.mrf.mxu0
        %1521 = vmatprep.mubr.bf16.mxu0 0
        %1522 = vmatmul.mubr.bf16.gmra.mxu0 %v1458
        %v1523 = vpop.f32.mrf.mxu0
        %v1524 = vadd.f32 0.0, %v1523
        %v1525 = vpop.f32.mrf.mxu0
        %v1526 = vpop.f32.mrf.mxu0
        %v1527 = vadd.f32 0.0, %v1526
        %v1528 = vpop.f32.mrf.mxu0
        %1529 = vmatprep.mubr.bf16.mxu0 0
        %1530 = vmatmul.mubr.bf16.gmra.mxu0 %v1461
        %v1531 = vpop.f32.mrf.mxu0
        %v1532 = vadd.f32 0.0, %v1531
        %v1533 = vpop.f32.mrf.mxu0
        %v1534 = vpop.f32.mrf.mxu0
        %v1535 = vadd.f32 0.0, %v1534
        %v1536 = vpop.f32.mrf.mxu0
        %1537 = vmatprep.mubr.bf16.mxu0 0
        %1538 = vmatmul.mubr.bf16.gmra.mxu0 %v1464
        %v1539 = vpop.f32.mrf.mxu0
        %v1540 = vadd.f32 0.0, %v1539
        %v1541 = vpop.f32.mrf.mxu0
        %v1542 = vpop.f32.mrf.mxu0
        %v1543 = vadd.f32 0.0, %v1542
        %v1544 = vpop.f32.mrf.mxu0
        %1545 = vmatprep.mubr.bf16.mxu0 0
        %1546 = vmatmul.mubr.bf16.gmra.mxu0 %v1467
        %v1547 = vpop.f32.mrf.mxu0
        %v1548 = vadd.f32 0.0, %v1547
        %v1549 = vpop.f32.mrf.mxu0
        %v1550 = vpop.f32.mrf.mxu0
        %v1551 = vadd.f32 0.0, %v1550
        %v1552 = vpop.f32.mrf.mxu0
        %1553 = vmatprep.mubr.bf16.mxu0 0
        %1554 = vmatmul.mubr.bf16.gmra.mxu0 %v1470
        %v1555 = vpop.f32.mrf.mxu0
        %v1556 = vadd.f32 0.0, %v1555
        %v1557 = vpop.f32.mrf.mxu0
        %v1558 = vpop.f32.mrf.mxu0
        %v1559 = vadd.f32 0.0, %v1558
        %v1560 = vpop.f32.mrf.mxu0
        %1561 = vmatprep.mubr.bf16.mxu0 0
        %1562 = vmatmul.mubr.bf16.gmra.mxu0 %v1473
        %v1563 = vpop.f32.mrf.mxu0
        %v1564 = vadd.f32 0.0, %v1563
        %v1565 = vpop.f32.mrf.mxu0
        %v1566 = vpop.f32.mrf.mxu0
        %v1567 = vadd.f32 0.0, %v1566
        %v1568 = vpop.f32.mrf.mxu0
        %1569 = vmatprep.mubr.bf16.mxu0 0
        %1570 = vmatmul.mubr.bf16.gmra.mxu0 %v1476
        %v1571 = vpop.f32.mrf.mxu0
        %v1572 = vadd.f32 0.0, %v1571
        %v1573 = vpop.f32.mrf.mxu0
        %v1574 = vpop.f32.mrf.mxu0
        %v1575 = vadd.f32 0.0, %v1574
        %v1576 = vpop.f32.mrf.mxu0
        %1577 = vdwg.mxu0
        %v1578 = vsel %vm872, -1e+30, %v1516
        %v1579 = vsel %vm872, -1e+30, %v1519
        %v1580 = vsel %vm872, -1e+30, %v1524
        %v1581 = vsel %vm872, -1e+30, %v1527
        %v1582 = vsel %vm872, -1e+30, %v1532
        %v1583 = vsel %vm872, -1e+30, %v1535
        %v1584 = vsel %vm872, -1e+30, %v1540
        %v1585 = vsel %vm872, -1e+30, %v1543
        %v1586 = vsel %vm872, -1e+30, %v1548
        %v1587 = vsel %vm872, -1e+30, %v1551
        %v1588 = vsel %vm872, -1e+30, %v1556
        %v1589 = vsel %vm872, -1e+30, %v1559
        %v1590 = vsel %vm872, -1e+30, %v1564
        %v1591 = vsel %vm872, -1e+30, %v1567
        %v1592 = vsel %vm872, -1e+30, %v1572
        %v1593 = vsel %vm872, -1e+30, %v1575
        %1594 = vmax.xlane.f32.xlu0 %v1578
        %v1595 = vpop.xlane.xlu0 %1594
        %1596 = vmax.xlane.f32.xlu0 %v1579
        %v1597 = vpop.xlane.xlu0 %1596
        %1598 = vmax.xlane.f32.xlu0 %v1580
        %v1599 = vpop.xlane.xlu0 %1598
        %1600 = vmax.xlane.f32.xlu0 %v1581
        %v1601 = vpop.xlane.xlu0 %1600
        %1602 = vmax.xlane.f32.xlu0 %v1582
        %v1603 = vpop.xlane.xlu0 %1602
        %1604 = vmax.xlane.f32.xlu0 %v1583
        %v1605 = vpop.xlane.xlu0 %1604
        %1606 = vmax.xlane.f32.xlu0 %v1584
        %v1607 = vpop.xlane.xlu0 %1606
        %1608 = vmax.xlane.f32.xlu0 %v1585
        %v1609 = vpop.xlane.xlu0 %1608
        %1610 = vmax.xlane.f32.xlu0 %v1586
        %v1611 = vpop.xlane.xlu0 %1610
        %1612 = vmax.xlane.f32.xlu0 %v1587
        %v1613 = vpop.xlane.xlu0 %1612
        %1614 = vmax.xlane.f32.xlu0 %v1588
        %v1615 = vpop.xlane.xlu0 %1614
        %1616 = vmax.xlane.f32.xlu0 %v1589
        %v1617 = vpop.xlane.xlu0 %1616
        %1618 = vmax.xlane.f32.xlu0 %v1590
        %v1619 = vpop.xlane.xlu0 %1618
        %1620 = vmax.xlane.f32.xlu0 %v1591
        %v1621 = vpop.xlane.xlu0 %1620
        %1622 = vmax.xlane.f32.xlu0 %v1592
        %v1623 = vpop.xlane.xlu0 %1622
        %1624 = vmax.xlane.f32.xlu0 %v1593
        %v1625 = vpop.xlane.xlu0 %1624
        %v1626 = vsub.f32 %v1578, %v1595
        %v1627 = vsub.f32 %v1579, %v1597
        %v1628 = vsub.f32 %v1580, %v1599
        %v1629 = vsub.f32 %v1581, %v1601
        %v1630 = vsub.f32 %v1582, %v1603
        %v1631 = vsub.f32 %v1583, %v1605
        %v1632 = vsub.f32 %v1584, %v1607
        %v1633 = vsub.f32 %v1585, %v1609
        %v1634 = vsub.f32 %v1586, %v1611
        %v1635 = vsub.f32 %v1587, %v1613
        %v1636 = vsub.f32 %v1588, %v1615
        %v1637 = vsub.f32 %v1589, %v1617
        %v1638 = vsub.f32 %v1590, %v1619
        %v1639 = vsub.f32 %v1591, %v1621
        %v1640 = vsub.f32 %v1592, %v1623
        %v1641 = vsub.f32 %v1593, %v1625
        %v1642 = vmul.f32 %v1626, 1.442695
        %v1643 = vpow.pop %v1642
        %v1644 = vmul.f32 %v1627, 1.442695
        %v1645 = vpow.pop %v1644
        %v1646 = vmul.f32 %v1628, 1.442695
        %v1647 = vpow.pop %v1646
        %v1648 = vmul.f32 %v1629, 1.442695
        %v1649 = vpow.pop %v1648
        %v1650 = vmul.f32 %v1630, 1.442695
        %v1651 = vpow.pop %v1650
        %v1652 = vmul.f32 %v1631, 1.442695
        %v1653 = vpow.pop %v1652
        %v1654 = vmul.f32 %v1632, 1.442695
        %v1655 = vpow.pop %v1654
        %v1656 = vmul.f32 %v1633, 1.442695
        %v1657 = vpow.pop %v1656
        %v1658 = vmul.f32 %v1634, 1.442695
        %v1659 = vpow.pop %v1658
        %v1660 = vmul.f32 %v1635, 1.442695
        %v1661 = vpow.pop %v1660
        %v1662 = vmul.f32 %v1636, 1.442695
        %v1663 = vpow.pop %v1662
        %v1664 = vmul.f32 %v1637, 1.442695
        %v1665 = vpow.pop %v1664
        %v1666 = vmul.f32 %v1638, 1.442695
        %v1667 = vpow.pop %v1666
        %v1668 = vmul.f32 %v1639, 1.442695
        %v1669 = vpow.pop %v1668
        %v1670 = vmul.f32 %v1640, 1.442695
        %v1671 = vpow.pop %v1670
        %v1672 = vmul.f32 %v1641, 1.442695
        %v1673 = vpow.pop %v1672
        %1674 = vadd.xlane.f32.xlu0 %v1643
        %v1675 = vpop.xlane.xlu0 %1674
        %1676 = vadd.xlane.f32.xlu0 %v1645
        %v1677 = vpop.xlane.xlu0 %1676
        %1678 = vadd.xlane.f32.xlu0 %v1647
        %v1679 = vpop.xlane.xlu0 %1678
        %1680 = vadd.xlane.f32.xlu0 %v1649
        %v1681 = vpop.xlane.xlu0 %1680
        %1682 = vadd.xlane.f32.xlu0 %v1651
        %v1683 = vpop.xlane.xlu0 %1682
        %1684 = vadd.xlane.f32.xlu0 %v1653
        %v1685 = vpop.xlane.xlu0 %1684
        %1686 = vadd.xlane.f32.xlu0 %v1655
        %v1687 = vpop.xlane.xlu0 %1686
        %1688 = vadd.xlane.f32.xlu0 %v1657
        %v1689 = vpop.xlane.xlu0 %1688
        %1690 = vadd.xlane.f32.xlu0 %v1659
        %v1691 = vpop.xlane.xlu0 %1690
        %1692 = vadd.xlane.f32.xlu0 %v1661
        %v1693 = vpop.xlane.xlu0 %1692
        %1694 = vadd.xlane.f32.xlu0 %v1663
        %v1695 = vpop.xlane.xlu0 %1694
        %1696 = vadd.xlane.f32.xlu0 %v1665
        %v1697 = vpop.xlane.xlu0 %1696
        %1698 = vadd.xlane.f32.xlu0 %v1667
        %v1699 = vpop.xlane.xlu0 %1698
        %1700 = vadd.xlane.f32.xlu0 %v1669
        %v1701 = vpop.xlane.xlu0 %1700
        %1702 = vadd.xlane.f32.xlu0 %v1671
        %v1703 = vpop.xlane.xlu0 %1702
        %1704 = vadd.xlane.f32.xlu0 %v1673
        %v1705 = vpop.xlane.xlu0 %1704
        %v1706 = vrcp.pop %v1675
        %v1707 = vrcp.pop %v1677
        %v1708 = vrcp.pop %v1679
        %v1709 = vrcp.pop %v1681
        %v1710 = vrcp.pop %v1683
        %v1711 = vrcp.pop %v1685
        %v1712 = vrcp.pop %v1687
        %v1713 = vrcp.pop %v1689
        %v1714 = vrcp.pop %v1691
        %v1715 = vrcp.pop %v1693
        %v1716 = vrcp.pop %v1695
        %v1717 = vrcp.pop %v1697
        %v1718 = vrcp.pop %v1699
        %v1719 = vrcp.pop %v1701
        %v1720 = vrcp.pop %v1703
        %v1721 = vrcp.pop %v1705
        %v1722 = vmul.f32 %v1643, %v1706
        %v1723 = vmul.f32 %v1645, %v1707
        %v1724 = vmul.f32 %v1647, %v1708
        %v1725 = vmul.f32 %v1649, %v1709
        %v1726 = vmul.f32 %v1651, %v1710
        %v1727 = vmul.f32 %v1653, %v1711
        %v1728 = vmul.f32 %v1655, %v1712
        %v1729 = vmul.f32 %v1657, %v1713
        %v1730 = vmul.f32 %v1659, %v1714
        %v1731 = vmul.f32 %v1661, %v1715
        %v1732 = vmul.f32 %v1663, %v1716
        %v1733 = vmul.f32 %v1665, %v1717
        %v1734 = vmul.f32 %v1667, %v1718
        %v1735 = vmul.f32 %v1669, %v1719
        %v1736 = vmul.f32 %v1671, %v1720
        %v1737 = vmul.f32 %v1673, %v1721
        %v1738 = vpack.c.bf16 %v1723, %v1722
        %v1739 = vpack.c.bf16 %v1725, %v1724
        %v1740 = vpack.c.bf16 %v1727, %v1726
        %v1741 = vpack.c.bf16 %v1729, %v1728
        %v1742 = vpack.c.bf16 %v1731, %v1730
        %v1743 = vpack.c.bf16 %v1733, %v1732
        %v1744 = vpack.c.bf16 %v1735, %v1734
        %v1745 = vpack.c.bf16 %v1737, %v1736
        %1746 = vmatprep.subr.bf16.mxu0 0
        %1747 = vmatpush1.bf16.xpose.msra.mxu0 %v1745
        %1748 = vmatprep.subr.bf16.mxu0 0
        %1749 = vmatpush1.bf16.xpose.msra.mxu0 %v1744
        %1750 = vmatprep.subr.bf16.mxu0 0
        %1751 = vmatpush1.bf16.xpose.msra.mxu0 %v1743
        %1752 = vmatprep.subr.bf16.mxu0 0
        %1753 = vmatpush1.bf16.xpose.msra.mxu0 %v1742
        %1754 = vmatprep.subr.bf16.mxu0 0
        %1755 = vmatpush1.bf16.xpose.msra.mxu0 %v1741
        %1756 = vmatprep.subr.bf16.mxu0 0
        %1757 = vmatpush1.bf16.xpose.msra.mxu0 %v1740
        %1758 = vmatprep.subr.bf16.mxu0 0
        %1759 = vmatpush1.bf16.xpose.msra.mxu0 %v1739
        %1760 = vmatprep.subr.bf16.mxu0 0
        %1761 = vmatpush1.bf16.xpose.msra.mxu0 %v1738
        %1762 = vmatprep.subr.bf16.mxu0 0
        %1763 = vmatpush2.bf16.xpose.msra.mxu0 0
        %1764 = vmatprep.subr.bf16.mxu0 0
        %1765 = vmatpush2.bf16.xpose.msra.mxu0 0
        %1766 = vmatprep.subr.bf16.mxu0 0
        %1767 = vmatpush2.bf16.xpose.msra.mxu0 0
        %1768 = vmatprep.subr.bf16.mxu0 0
        %1769 = vmatpush2.bf16.xpose.msra.mxu0 0
        %1770 = vmatprep.subr.bf16.mxu0 0
        %1771 = vmatpush2.bf16.xpose.msra.mxu0 0
        %1772 = vmatprep.subr.bf16.mxu0 0
        %1773 = vmatpush2.bf16.xpose.msra.mxu0 0
        %1774 = vmatprep.subr.bf16.mxu0 0
        %1775 = vmatpush2.bf16.xpose.msra.mxu0 0
        %1776 = vmatprep.subr.bf16.mxu0 0
        %1777 = vmatpush2.bf16.xpose.msra.mxu0 0
        %1778 = vmatprep.mubr.bf16.mxu0 0
        %1779 = vmatmul.mubr.bf16.gmra.mxu0 %v1437
        %v1780 = vpop.f32.mrf.mxu0
        %v1781 = vadd.f32 0.0, %v1780
        %v1782 = vpop.f32.mrf.mxu0
        %v1783 = vpop.f32.mrf.mxu0
        %v1784 = vpop.f32.mrf.mxu0
        %1785 = vdwg.mxu0
        %1786 = vst [vmem:[#allocation4 + $0x10] sm:$0xff] %v1781
        %v1787 = vld [vmem:[#allocation2 + $0xc] sm:$0xf]
        %v1788 = vld [vmem:[#allocation3 + $0xc] sm:$0xf]
        %v1790 = vrot.slane %v720, 4
        %1792 = vxpose.xlu0.c.b16.start [1/8] %v1790, 128
        %1793 = vxpose.xlu0.c.b16.cont [2/8] 0, 128
        %1794 = vxpose.xlu0.c.b16.cont [3/8] 0, 128
        %1795 = vxpose.xlu0.c.b16.cont [4/8] 0, 128
        %1796 = vxpose.xlu0.c.b16.cont [5/8] 0, 128
        %1797 = vxpose.xlu0.c.b16.cont [6/8] 0, 128
        %1798 = vxpose.xlu0.c.b16.cont [7/8] 0, 128
        %1799 = vxpose.xlu0.c.b16.end [8/8] 0, 128
        %v1800 = vpop.trf.xlu0
        %v1801 = vpop.trf.xlu0
        %v1802 = vpop.trf.xlu0
        %v1803 = vpop.trf.xlu0
        %v1804 = vpop.trf.xlu0
        %v1805 = vpop.trf.xlu0
        %v1806 = vpop.trf.xlu0
        %v1807 = vpop.trf.xlu0
        %v1809 = vsel %vm741, %v1800, 0
        %v1812 = vsel %vm741, %v1801, 0
        %v1815 = vsel %vm741, %v1802, 0
        %v1818 = vsel %vm741, %v1803, 0
        %v1821 = vsel %vm741, %v1804, 0
        %v1824 = vsel %vm741, %v1805, 0
        %v1827 = vsel %vm741, %v1806, 0
        %v1830 = vsel %vm741, %v1807, 0
        %v1833 = vsel %vm766, %v1787, 0
        %1835 = vmatprep.subr.bf16.mxu0 0
        %1836 = vmatpush1.bf16.msra.mxu0 0
        %1837 = vmatprep.subr.bf16.mxu0 0
        %1838 = vmatpush1.bf16.msra.mxu0 0
        %1839 = vmatprep.subr.bf16.mxu0 0
        %1840 = vmatpush1.bf16.msra.mxu0 0
        %1841 = vmatprep.subr.bf16.mxu0 0
        %1842 = vmatpush1.bf16.msra.mxu0 0
        %1843 = vmatprep.subr.bf16.mxu0 0
        %1844 = vmatpush1.bf16.msra.mxu0 0
        %1845 = vmatprep.subr.bf16.mxu0 0
        %1846 = vmatpush1.bf16.msra.mxu0 0
        %1847 = vmatprep.subr.bf16.mxu0 0
        %1848 = vmatpush1.bf16.msra.mxu0 0
        %1849 = vmatprep.subr.bf16.mxu0 0
        %1850 = vmatpush1.bf16.msra.mxu0 %v1833
        %1851 = vmatprep.subr.bf16.mxu0 0
        %1852 = vmatpush2.bf16.msra.mxu0 0
        %1853 = vmatprep.subr.bf16.mxu0 0
        %1854 = vmatpush2.bf16.msra.mxu0 0
        %1855 = vmatprep.subr.bf16.mxu0 0
        %1856 = vmatpush2.bf16.msra.mxu0 0
        %1857 = vmatprep.subr.bf16.mxu0 0
        %1858 = vmatpush2.bf16.msra.mxu0 0
        %1859 = vmatprep.subr.bf16.mxu0 0
        %1860 = vmatpush2.bf16.msra.mxu0 0
        %1861 = vmatprep.subr.bf16.mxu0 0
        %1862 = vmatpush2.bf16.msra.mxu0 0
        %1863 = vmatprep.subr.bf16.mxu0 0
        %1864 = vmatpush2.bf16.msra.mxu0 0
        %1865 = vmatprep.subr.bf16.mxu0 0
        %1866 = vmatpush2.bf16.msra.mxu0 0
        %1867 = vmatprep.mubr.bf16.mxu0 0
        %1868 = vmatmul.mubr.bf16.gmra.mxu0 %v1809
        %v1869 = vpop.f32.mrf.mxu0
        %v1870 = vadd.f32 0.0, %v1869
        %v1871 = vpop.f32.mrf.mxu0
        %v1872 = vpop.f32.mrf.mxu0
        %v1873 = vadd.f32 0.0, %v1872
        %v1874 = vpop.f32.mrf.mxu0
        %1875 = vmatprep.mubr.bf16.mxu0 0
        %1876 = vmatmul.mubr.bf16.gmra.mxu0 %v1812
        %v1877 = vpop.f32.mrf.mxu0
        %v1878 = vadd.f32 0.0, %v1877
        %v1879 = vpop.f32.mrf.mxu0
        %v1880 = vpop.f32.mrf.mxu0
        %v1881 = vadd.f32 0.0, %v1880
        %v1882 = vpop.f32.mrf.mxu0
        %1883 = vmatprep.mubr.bf16.mxu0 0
        %1884 = vmatmul.mubr.bf16.gmra.mxu0 %v1815
        %v1885 = vpop.f32.mrf.mxu0
        %v1886 = vadd.f32 0.0, %v1885
        %v1887 = vpop.f32.mrf.mxu0
        %v1888 = vpop.f32.mrf.mxu0
        %v1889 = vadd.f32 0.0, %v1888
        %v1890 = vpop.f32.mrf.mxu0
        %1891 = vmatprep.mubr.bf16.mxu0 0
        %1892 = vmatmul.mubr.bf16.gmra.mxu0 %v1818
        %v1893 = vpop.f32.mrf.mxu0
        %v1894 = vadd.f32 0.0, %v1893
        %v1895 = vpop.f32.mrf.mxu0
        %v1896 = vpop.f32.mrf.mxu0
        %v1897 = vadd.f32 0.0, %v1896
        %v1898 = vpop.f32.mrf.mxu0
        %1899 = vmatprep.mubr.bf16.mxu0 0
        %1900 = vmatmul.mubr.bf16.gmra.mxu0 %v1821
        %v1901 = vpop.f32.mrf.mxu0
        %v1902 = vadd.f32 0.0, %v1901
        %v1903 = vpop.f32.mrf.mxu0
        %v1904 = vpop.f32.mrf.mxu0
        %v1905 = vadd.f32 0.0, %v1904
        %v1906 = vpop.f32.mrf.mxu0
        %1907 = vmatprep.mubr.bf16.mxu0 0
        %1908 = vmatmul.mubr.bf16.gmra.mxu0 %v1824
        %v1909 = vpop.f32.mrf.mxu0
        %v1910 = vadd.f32 0.0, %v1909
        %v1911 = vpop.f32.mrf.mxu0
        %v1912 = vpop.f32.mrf.mxu0
        %v1913 = vadd.f32 0.0, %v1912
        %v1914 = vpop.f32.mrf.mxu0
        %1915 = vmatprep.mubr.bf16.mxu0 0
        %1916 = vmatmul.mubr.bf16.gmra.mxu0 %v1827
        %v1917 = vpop.f32.mrf.mxu0
        %v1918 = vadd.f32 0.0, %v1917
        %v1919 = vpop.f32.mrf.mxu0
        %v1920 = vpop.f32.mrf.mxu0
        %v1921 = vadd.f32 0.0, %v1920
        %v1922 = vpop.f32.mrf.mxu0
        %1923 = vmatprep.mubr.bf16.mxu0 0
        %1924 = vmatmul.mubr.bf16.gmra.mxu0 %v1830
        %v1925 = vpop.f32.mrf.mxu0
        %v1926 = vadd.f32 0.0, %v1925
        %v1927 = vpop.f32.mrf.mxu0
        %v1928 = vpop.f32.mrf.mxu0
        %v1929 = vadd.f32 0.0, %v1928
        %v1930 = vpop.f32.mrf.mxu0
        %1931 = vdwg.mxu0
        %v1932 = vsel %vm872, -1e+30, %v1870
        %v1933 = vsel %vm872, -1e+30, %v1873
        %v1934 = vsel %vm872, -1e+30, %v1878
        %v1935 = vsel %vm872, -1e+30, %v1881
        %v1936 = vsel %vm872, -1e+30, %v1886
        %v1937 = vsel %vm872, -1e+30, %v1889
        %v1938 = vsel %vm872, -1e+30, %v1894
        %v1939 = vsel %vm872, -1e+30, %v1897
        %v1940 = vsel %vm872, -1e+30, %v1902
        %v1941 = vsel %vm872, -1e+30, %v1905
        %v1942 = vsel %vm872, -1e+30, %v1910
        %v1943 = vsel %vm872, -1e+30, %v1913
        %v1944 = vsel %vm872, -1e+30, %v1918
        %v1945 = vsel %vm872, -1e+30, %v1921
        %v1946 = vsel %vm872, -1e+30, %v1926
        %v1947 = vsel %vm872, -1e+30, %v1929
        %1948 = vmax.xlane.f32.xlu0 %v1932
        %v1949 = vpop.xlane.xlu0 %1948
        %1950 = vmax.xlane.f32.xlu0 %v1933
        %v1951 = vpop.xlane.xlu0 %1950
        %1952 = vmax.xlane.f32.xlu0 %v1934
        %v1953 = vpop.xlane.xlu0 %1952
        %1954 = vmax.xlane.f32.xlu0 %v1935
        %v1955 = vpop.xlane.xlu0 %1954
        %1956 = vmax.xlane.f32.xlu0 %v1936
        %v1957 = vpop.xlane.xlu0 %1956
        %1958 = vmax.xlane.f32.xlu0 %v1937
        %v1959 = vpop.xlane.xlu0 %1958
        %1960 = vmax.xlane.f32.xlu0 %v1938
        %v1961 = vpop.xlane.xlu0 %1960
        %1962 = vmax.xlane.f32.xlu0 %v1939
        %v1963 = vpop.xlane.xlu0 %1962
        %1964 = vmax.xlane.f32.xlu0 %v1940
        %v1965 = vpop.xlane.xlu0 %1964
        %1966 = vmax.xlane.f32.xlu0 %v1941
        %v1967 = vpop.xlane.xlu0 %1966
        %1968 = vmax.xlane.f32.xlu0 %v1942
        %v1969 = vpop.xlane.xlu0 %1968
        %1970 = vmax.xlane.f32.xlu0 %v1943
        %v1971 = vpop.xlane.xlu0 %1970
        %1972 = vmax.xlane.f32.xlu0 %v1944
        %v1973 = vpop.xlane.xlu0 %1972
        %1974 = vmax.xlane.f32.xlu0 %v1945
        %v1975 = vpop.xlane.xlu0 %1974
        %1976 = vmax.xlane.f32.xlu0 %v1946
        %v1977 = vpop.xlane.xlu0 %1976
        %1978 = vmax.xlane.f32.xlu0 %v1947
        %v1979 = vpop.xlane.xlu0 %1978
        %v1980 = vsub.f32 %v1932, %v1949
        %v1981 = vsub.f32 %v1933, %v1951
        %v1982 = vsub.f32 %v1934, %v1953
        %v1983 = vsub.f32 %v1935, %v1955
        %v1984 = vsub.f32 %v1936, %v1957
        %v1985 = vsub.f32 %v1937, %v1959
        %v1986 = vsub.f32 %v1938, %v1961
        %v1987 = vsub.f32 %v1939, %v1963
        %v1988 = vsub.f32 %v1940, %v1965
        %v1989 = vsub.f32 %v1941, %v1967
        %v1990 = vsub.f32 %v1942, %v1969
        %v1991 = vsub.f32 %v1943, %v1971
        %v1992 = vsub.f32 %v1944, %v1973
        %v1993 = vsub.f32 %v1945, %v1975
        %v1994 = vsub.f32 %v1946, %v1977
        %v1995 = vsub.f32 %v1947, %v1979
        %v1996 = vmul.f32 %v1980, 1.442695
        %v1997 = vpow.pop %v1996
        %v1998 = vmul.f32 %v1981, 1.442695
        %v1999 = vpow.pop %v1998
        %v2000 = vmul.f32 %v1982, 1.442695
        %v2001 = vpow.pop %v2000
        %v2002 = vmul.f32 %v1983, 1.442695
        %v2003 = vpow.pop %v2002
        %v2004 = vmul.f32 %v1984, 1.442695
        %v2005 = vpow.pop %v2004
        %v2006 = vmul.f32 %v1985, 1.442695
        %v2007 = vpow.pop %v2006
        %v2008 = vmul.f32 %v1986, 1.442695
        %v2009 = vpow.pop %v2008
        %v2010 = vmul.f32 %v1987, 1.442695
        %v2011 = vpow.pop %v2010
        %v2012 = vmul.f32 %v1988, 1.442695
        %v2013 = vpow.pop %v2012
        %v2014 = vmul.f32 %v1989, 1.442695
        %v2015 = vpow.pop %v2014
        %v2016 = vmul.f32 %v1990, 1.442695
        %v2017 = vpow.pop %v2016
        %v2018 = vmul.f32 %v1991, 1.442695
        %v2019 = vpow.pop %v2018
        %v2020 = vmul.f32 %v1992, 1.442695
        %v2021 = vpow.pop %v2020
        %v2022 = vmul.f32 %v1993, 1.442695
        %v2023 = vpow.pop %v2022
        %v2024 = vmul.f32 %v1994, 1.442695
        %v2025 = vpow.pop %v2024
        %v2026 = vmul.f32 %v1995, 1.442695
        %v2027 = vpow.pop %v2026
        %2028 = vadd.xlane.f32.xlu0 %v1997
        %v2029 = vpop.xlane.xlu0 %2028
        %2030 = vadd.xlane.f32.xlu0 %v1999
        %v2031 = vpop.xlane.xlu0 %2030
        %2032 = vadd.xlane.f32.xlu0 %v2001
        %v2033 = vpop.xlane.xlu0 %2032
        %2034 = vadd.xlane.f32.xlu0 %v2003
        %v2035 = vpop.xlane.xlu0 %2034
        %2036 = vadd.xlane.f32.xlu0 %v2005
        %v2037 = vpop.xlane.xlu0 %2036
        %2038 = vadd.xlane.f32.xlu0 %v2007
        %v2039 = vpop.xlane.xlu0 %2038
        %2040 = vadd.xlane.f32.xlu0 %v2009
        %v2041 = vpop.xlane.xlu0 %2040
        %2042 = vadd.xlane.f32.xlu0 %v2011
        %v2043 = vpop.xlane.xlu0 %2042
        %2044 = vadd.xlane.f32.xlu0 %v2013
        %v2045 = vpop.xlane.xlu0 %2044
        %2046 = vadd.xlane.f32.xlu0 %v2015
        %v2047 = vpop.xlane.xlu0 %2046
        %2048 = vadd.xlane.f32.xlu0 %v2017
        %v2049 = vpop.xlane.xlu0 %2048
        %2050 = vadd.xlane.f32.xlu0 %v2019
        %v2051 = vpop.xlane.xlu0 %2050
        %2052 = vadd.xlane.f32.xlu0 %v2021
        %v2053 = vpop.xlane.xlu0 %2052
        %2054 = vadd.xlane.f32.xlu0 %v2023
        %v2055 = vpop.xlane.xlu0 %2054
        %2056 = vadd.xlane.f32.xlu0 %v2025
        %v2057 = vpop.xlane.xlu0 %2056
        %2058 = vadd.xlane.f32.xlu0 %v2027
        %v2059 = vpop.xlane.xlu0 %2058
        %v2060 = vrcp.pop %v2029
        %v2061 = vrcp.pop %v2031
        %v2062 = vrcp.pop %v2033
        %v2063 = vrcp.pop %v2035
        %v2064 = vrcp.pop %v2037
        %v2065 = vrcp.pop %v2039
        %v2066 = vrcp.pop %v2041
        %v2067 = vrcp.pop %v2043
        %v2068 = vrcp.pop %v2045
        %v2069 = vrcp.pop %v2047
        %v2070 = vrcp.pop %v2049
        %v2071 = vrcp.pop %v2051
        %v2072 = vrcp.pop %v2053
        %v2073 = vrcp.pop %v2055
        %v2074 = vrcp.pop %v2057
        %v2075 = vrcp.pop %v2059
        %v2076 = vmul.f32 %v1997, %v2060
        %v2077 = vmul.f32 %v1999, %v2061
        %v2078 = vmul.f32 %v2001, %v2062
        %v2079 = vmul.f32 %v2003, %v2063
        %v2080 = vmul.f32 %v2005, %v2064
        %v2081 = vmul.f32 %v2007, %v2065
        %v2082 = vmul.f32 %v2009, %v2066
        %v2083 = vmul.f32 %v2011, %v2067
        %v2084 = vmul.f32 %v2013, %v2068
        %v2085 = vmul.f32 %v2015, %v2069
        %v2086 = vmul.f32 %v2017, %v2070
        %v2087 = vmul.f32 %v2019, %v2071
        %v2088 = vmul.f32 %v2021, %v2072
        %v2089 = vmul.f32 %v2023, %v2073
        %v2090 = vmul.f32 %v2025, %v2074
        %v2091 = vmul.f32 %v2027, %v2075
        %v2092 = vpack.c.bf16 %v2077, %v2076
        %v2093 = vpack.c.bf16 %v2079, %v2078
        %v2094 = vpack.c.bf16 %v2081, %v2080
        %v2095 = vpack.c.bf16 %v2083, %v2082
        %v2096 = vpack.c.bf16 %v2085, %v2084
        %v2097 = vpack.c.bf16 %v2087, %v2086
        %v2098 = vpack.c.bf16 %v2089, %v2088
        %v2099 = vpack.c.bf16 %v2091, %v2090
        %2100 = vmatprep.subr.bf16.mxu0 0
        %2101 = vmatpush1.bf16.xpose.msra.mxu0 %v2099
        %2102 = vmatprep.subr.bf16.mxu0 0
        %2103 = vmatpush1.bf16.xpose.msra.mxu0 %v2098
        %2104 = vmatprep.subr.bf16.mxu0 0
        %2105 = vmatpush1.bf16.xpose.msra.mxu0 %v2097
        %2106 = vmatprep.subr.bf16.mxu0 0
        %2107 = vmatpush1.bf16.xpose.msra.mxu0 %v2096
        %2108 = vmatprep.subr.bf16.mxu0 0
        %2109 = vmatpush1.bf16.xpose.msra.mxu0 %v2095
        %2110 = vmatprep.subr.bf16.mxu0 0
        %2111 = vmatpush1.bf16.xpose.msra.mxu0 %v2094
        %2112 = vmatprep.subr.bf16.mxu0 0
        %2113 = vmatpush1.bf16.xpose.msra.mxu0 %v2093
        %2114 = vmatprep.subr.bf16.mxu0 0
        %2115 = vmatpush1.bf16.xpose.msra.mxu0 %v2092
        %2116 = vmatprep.subr.bf16.mxu0 0
        %2117 = vmatpush2.bf16.xpose.msra.mxu0 0
        %2118 = vmatprep.subr.bf16.mxu0 0
        %2119 = vmatpush2.bf16.xpose.msra.mxu0 0
        %2120 = vmatprep.subr.bf16.mxu0 0
        %2121 = vmatpush2.bf16.xpose.msra.mxu0 0
        %2122 = vmatprep.subr.bf16.mxu0 0
        %2123 = vmatpush2.bf16.xpose.msra.mxu0 0
        %2124 = vmatprep.subr.bf16.mxu0 0
        %2125 = vmatpush2.bf16.xpose.msra.mxu0 0
        %2126 = vmatprep.subr.bf16.mxu0 0
        %2127 = vmatpush2.bf16.xpose.msra.mxu0 0
        %2128 = vmatprep.subr.bf16.mxu0 0
        %2129 = vmatpush2.bf16.xpose.msra.mxu0 0
        %2130 = vmatprep.subr.bf16.mxu0 0
        %2131 = vmatpush2.bf16.xpose.msra.mxu0 0
        %2132 = vmatprep.mubr.bf16.mxu0 0
        %2133 = vmatmul.mubr.bf16.gmra.mxu0 %v1788
        %v2134 = vpop.f32.mrf.mxu0
        %v2135 = vadd.f32 0.0, %v2134
        %v2136 = vpop.f32.mrf.mxu0
        %v2137 = vpop.f32.mrf.mxu0
        %v2138 = vpop.f32.mrf.mxu0
        %2139 = vdwg.mxu0
        %2140 = vst [vmem:[#allocation4 + $0x18] sm:$0xff] %v2135
        %v2141 = vld [vmem:[#allocation4] sm:$0xff]
        %v2142 = vld [vmem:[#allocation4 + $0x8] sm:$0xff]
        %v2143 = vld [vmem:[#allocation4 + $0x10] sm:$0xff]
        %v2144 = vld [vmem:[#allocation4 + $0x18] sm:$0xff]
        %v2145 = vpack.c.bf16 %v2142, %v2141
        %v2146 = vpack.c.bf16 %v2144, %v2143
        %v2147 = vld [vmem:[#allocation14] sm:$0xf]
        %v2148 = vld [vmem:[#allocation14 + $0x4] sm:$0xf]
        %v2149 = vld [vmem:[#allocation14 + $0x8] sm:$0xf]
        %v2150 = vld [vmem:[#allocation14 + $0xc] sm:$0xf]
        %v2155 = vunpack.c.l.b16 %v2147
        %v2156 = vunpack.c.l.b16 %v2148
        %v2157 = vunpack.c.l.b16 %v2149
        %v2158 = vunpack.c.l.b16 %v2150
        %v2159 = vpack.c.b16 %v2156, %v2155
        %v2160 = vpack.c.b16 %v2158, %v2157
        %v2162 = vsel %vm663, %v2159, 0
        %v2165 = vsel %vm663, %v2160, 0
        %2167 = vmatprep.subr.bf16.mxu0 0
        %2168 = vmatpush1.bf16.msra.mxu0 0
        %2169 = vmatprep.subr.bf16.mxu0 0
        %2170 = vmatpush1.bf16.msra.mxu0 0
        %2171 = vmatprep.subr.bf16.mxu0 0
        %2172 = vmatpush1.bf16.msra.mxu0 0
        %2173 = vmatprep.subr.bf16.mxu0 0
        %2174 = vmatpush1.bf16.msra.mxu0 0
        %2175 = vmatprep.subr.bf16.mxu0 0
        %2176 = vmatpush1.bf16.msra.mxu0 0
        %2177 = vmatprep.subr.bf16.mxu0 0
        %2178 = vmatpush1.bf16.msra.mxu0 0
        %2179 = vmatprep.subr.bf16.mxu0 0
        %2180 = vmatpush1.bf16.msra.mxu0 %v2146
        %2181 = vmatprep.subr.bf16.mxu0 0
        %2182 = vmatpush1.bf16.msra.mxu0 %v2145
        %2183 = vmatprep.subr.bf16.mxu0 0
        %2184 = vmatpush2.bf16.msra.mxu0 0
        %2185 = vmatprep.subr.bf16.mxu0 0
        %2186 = vmatpush2.bf16.msra.mxu0 0
        %2187 = vmatprep.subr.bf16.mxu0 0
        %2188 = vmatpush2.bf16.msra.mxu0 0
        %2189 = vmatprep.subr.bf16.mxu0 0
        %2190 = vmatpush2.bf16.msra.mxu0 0
        %2191 = vmatprep.subr.bf16.mxu0 0
        %2192 = vmatpush2.bf16.msra.mxu0 0
        %2193 = vmatprep.subr.bf16.mxu0 0
        %2194 = vmatpush2.bf16.msra.mxu0 0
        %2195 = vmatprep.subr.bf16.mxu0 0
        %2196 = vmatpush2.bf16.msra.mxu0 0
        %2197 = vmatprep.subr.bf16.mxu0 0
        %2198 = vmatpush2.bf16.msra.mxu0 0
        %2199 = vmatprep.mubr.bf16.mxu0 0
        %2200 = vmatmul.mubr.bf16.gmra.mxu0 %v2162
        %v2201 = vpop.f32.mrf.mxu0
        %v2202 = vadd.f32 0.0, %v2201
        %v2203 = vpop.f32.mrf.mxu0
        %v2204 = vpop.f32.mrf.mxu0
        %v2205 = vadd.f32 0.0, %v2204
        %v2206 = vpop.f32.mrf.mxu0
        %2207 = vmatprep.mubr.bf16.mxu0 0
        %2208 = vmatmul.mubr.bf16.gmra.mxu0 %v2165
        %v2209 = vpop.f32.mrf.mxu0
        %v2210 = vadd.f32 0.0, %v2209
        %v2211 = vpop.f32.mrf.mxu0
        %v2212 = vpop.f32.mrf.mxu0
        %v2213 = vadd.f32 0.0, %v2212
        %v2214 = vpop.f32.mrf.mxu0
        %2215 = vdwg.mxu0
        %v2216 = vld [vmem:[%s427] sm:$0x1]
        %v2218 = vlaneseq
        %v2219 = vshrl.u32 %v2218, 7
        %v2220 = vsub.s32 0, %v2219
        %v2221 = vrot.slane %v2216, %v2220
        %v2223 = vmul.f32 %v2202, %v2221
        %v2224 = vmul.f32 %v2205, %v2221
        %v2225 = vmul.f32 %v2210, %v2221
        %v2226 = vmul.f32 %v2213, %v2221
        %2227 = vst [vmem:[%s421] sm:$0xff] %v2223
        %2228 = vst [vmem:[%s421 + $0x8] sm:$0xff] %v2224
        %2229 = vst [vmem:[%s421 + $0x10] sm:$0xff] %v2225
        %2230 = vst [vmem:[%s421 + $0x18] sm:$0xff] %v2226
        %s2231 = sand.u32 %s215, 1
        %s2232 = scalar_lea.sflag [#allocation7], %s2231
        %s2233 = sand.u32 %s215, 1
        %s2234 = smul.addr %s2233, 32
        %s2235 = scalar_lea.vmem [#allocation16], %s2234
        // Predicated region
        $region77: #{tpu_custom_call.1} parent=47 // pred_check
          %p2236 = pneg %p225
        $region78: #{tpu_custom_call.1} parent=47 // pred_check_branch
          %2238 = sbr.rel (%p2236) target = $region80
        $region79: #{tpu_custom_call.1} parent=47 // pred_region
          %s2240 = ssub.s32 512, 512
          %2241 = vsyncadd %s2232, %s2240
          %s2242 = smul.addr %s33, 4
          %s2243 = sadd.s32 %s34, %s2242
          %s2244 = smul.addr %s2243, 128
          %s2245 = scalar_lea.hbm %s7, %s2244
          %s2246 = sshll.u32 %s2235, 4
          %s2247 = int_to_ptr.vmem [resolvable:$true] %s2246
          %2252 = dma.vmem_to_hbm [thread:$0]  %s2247, 512, %s2245, %s2232, 128, 128, 8
        $region80: #{tpu_custom_call.1} parent=47 // pred_fallthru
          _
      $region48: #{tpu_custom_call.1} parent=5 // pred_fallthru
        _
      %p2253 = scmp.le.s32.totalorder 2, %s24
      // Predicated region
      $region81: #{tpu_custom_call.1} parent=5 // pred_check
        %p2254 = pneg %p2253
      $region82: #{tpu_custom_call.1} parent=5 // pred_check_branch
        %2256 = sbr.rel (%p2254) target = $region84
      $region83: #{tpu_custom_call.1} parent=5 // pred_region
        %s2257 = ssub.s32 %s24, 2
        // Predicated region
        $region85: #{tpu_custom_call.1} parent=83 // pred_check
          %p2258 = pneg %p231
        $region86: #{tpu_custom_call.1} parent=83 // pred_check_branch
          %2260 = sbr.rel (%p2258) target = $region88
        $region87: #{tpu_custom_call.1} parent=83 // pred_region
          %s2261 = sand.u32 %s216, 1
          %s2262 = scalar_lea.sflag [#allocation7], %s2261
          %s2263 = sand.u32 %s216, 1
          %s2264 = smul.addr %s2263, 32
          %s2265 = scalar_lea.vmem [#allocation16], %s2264
          %2266 = dma.done %s2262, 512
        $region88: #{tpu_custom_call.1} parent=83 // pred_fallthru
          _
      $region84: #{tpu_custom_call.1} parent=5 // pred_fallthru
        _
    $region6: #{tpu_custom_call.1} parent=1 // loop_footer
      %s28 = sadd.s32 1, %s24
    $region7: #{tpu_custom_call.1} parent=1 // loop_footer_branch
      %23 = sbr.rel target = $region3
    $region8: #{tpu_custom_call.1} parent=1 // loop_exit
      _
    %2267 = vsyncpa [#allocation6], 1
    %s2268 = scalar_lea.sflag [#allocation6], 1
    %2269 = vsyncpa %s2268, 1
    %2270 = vsyncpa [#allocation9], 1
    %s2271 = scalar_lea.sflag [#allocation9], 1
    %2272 = vsyncpa %s2271, 1
    %2273 = vsyncpa [#allocation12], 1
    %2274 = vsyncpa [#allocation15], 1
    %2275 = vsyncpa [#allocation7], 1
    %s2276 = scalar_lea.sflag [#allocation7], 1
    %2277 = vsyncpa %s2276, 1

</llo_original>
